<compile_context>
chip_gen: v7x
topology: tpu7x:2x2x1
jax: 0.10.0
libtpu: 0.0.40
codegen_flags: <defaults>
</compile_context>

<pallas_src>
import functools

import numpy as np
import jax
import jax.numpy as jnp
from jax import lax
from jax.experimental import pallas as pl
from jax.experimental.pallas import tpu as pltpu


def _round_up(x, m):
    return (x + m - 1) // m * m


# ------------------------------------------------------------------
# Fused Pallas kernel: 1x1 conv (matmul) + sigmoid + YOLO decode
# (ImplicitA / ImplicitM already folded into wt/bias at prepare time)
# ------------------------------------------------------------------
def _detect_decode_kernel(x_ref, wt_ref, bias_ref, code_ref, anch_ref,
                          raw_ref, dec_ref, *, W, H, stride, tm):
    # x_ref:(tm,Kp) bf16 | wt_ref:(Kp,Np) bf16 | bias/anch:(1,Np) f32 | code:(1,Np) i32
    t = jnp.dot(x_ref[...], wt_ref[...], preferred_element_type=jnp.float32)
    t = t + bias_ref[...]                          # ImplicitA/ImplicitM folded bias
    raw_ref[...] = t                               # raw head output (pre-sigmoid)

    sig = jax.nn.sigmoid(t)
    code = code_ref[...]                           # 0: x-col, 1: y-col, 2: wh-col, 3: rest

    # Row index -> (b, y, x); computed as a (tm, 1) column so the divisions are
    # per-row, not per-lane; exact float floor-div (values << 2^24).
    row = (pl.program_id(0) * tm +
           lax.broadcasted_iota(jnp.int32, (t.shape[0], 1), 0)).astype(jnp.float32)
    q = jnp.floor(row / float(W))                  # = b*H + y
    px = row - q * float(W)                        # = x
    py = q - jnp.floor(q / float(H)) * float(H)    # = y

    g = jnp.where(code == 0, px, py)               # (tm, Np) via broadcast
    s2 = sig * 2.0
    xy = (s2 - 0.5 + g) * stride
    wh = s2 * s2 * anch_ref[...]
    dec_ref[...] = jnp.where(code < 2, xy, jnp.where(code == 2, wh, sig))


# ------------------------------------------------------------------
# One-time per-level parameter preparation (static transforms out of hot path)
# ------------------------------------------------------------------
def prepare_level(w, b, ia, im_, anchors_lvl, nc, na):
    no = nc + 5
    N, C = int(w.shape[0]), int(w.shape[1])       # N = na*no, C = in channels
    Kp = _round_up(C, 128)
    Np = _round_up(N, 128)

    w2d = w.reshape(N, C)
    im_v = im_.reshape(N)
    b_eff = (b + w2d @ ia) * im_v                  # fold ImplicitA then ImplicitM (== fuse())
    w_eff = w2d * im_v[:, None]                    # fold ImplicitM into the weight
    wt_p = jnp.pad(jnp.transpose(w_eff, (1, 0)),
                   ((0, Kp - C), (0, Np - N))).astype(jnp.bfloat16)
    bias_p = jnp.pad(b_eff, (0, Np - N)).reshape(1, Np).astype(jnp.float32)

    code = np.full((1, Np), 3, np.int32)
    anch = np.zeros((1, Np), np.float32)
    anp = np.asarray(anchors_lvl, np.float32).reshape(na, 2)
    for a in range(na):
        base = a * no
        code[0, base + 0] = 0
        code[0, base + 1] = 1
        code[0, base + 2] = 2
        code[0, base + 3] = 2
        anch[0, base + 2] = anp[a, 0]
        anch[0, base + 3] = anp[a, 1]

    return dict(wt=wt_p, bias=bias_p,
                code=jnp.asarray(code), anch=jnp.asarray(anch),
                N=N, C=C, Kp=Kp, Np=Np)


# ------------------------------------------------------------------
# Per-level forward (wrapper around the fused kernel)
# ------------------------------------------------------------------
def detect_decode_level(x_nchw, prep, stride, nc, na):
    no = nc + 5
    B, C, H, W = map(int, x_nchw.shape)
    N, Kp, Np = prep["N"], prep["Kp"], prep["Np"]
    M = B * H * W
    tm = min(512, _round_up(M, 16))                # big tiles; still 8-sublane aligned
    Mp = _round_up(M, tm)

    a = jnp.transpose(x_nchw, (0, 2, 3, 1)).reshape(M, C)
    a = jnp.pad(a, ((0, Mp - M), (0, Kp - C))).astype(jnp.bfloat16)

    kernel = functools.partial(_detect_decode_kernel,
                               W=W, H=H, stride=float(stride), tm=tm)
    raw, dec = pl.pallas_call(
        kernel,
        out_shape=(jax.ShapeDtypeStruct((Mp, Np), jnp.float32),
                   jax.ShapeDtypeStruct((Mp, Np), jnp.float32)),
        grid_spec=pltpu.PrefetchScalarGridSpec(
            num_scalar_prefetch=0,
            grid=(Mp // tm,),
            in_specs=[
                pl.BlockSpec((tm, Kp), lambda i: (i, 0)),   # activations
                pl.BlockSpec((Kp, Np), lambda i: (0, 0)),   # fused weights (full panel)
                pl.BlockSpec((1, Np), lambda i: (0, 0)),    # fused bias
                pl.BlockSpec((1, Np), lambda i: (0, 0)),    # column role code
                pl.BlockSpec((1, Np), lambda i: (0, 0)),    # anchor vector
            ],
            out_specs=(pl.BlockSpec((tm, Np), lambda i: (i, 0)),
                       pl.BlockSpec((tm, Np), lambda i: (i, 0))),
        ),
        compiler_params=pltpu.CompilerParams(
            dimension_semantics=("parallel",)),
    )(a, prep["wt"], prep["bias"], prep["code"], prep["anch"])

    raw = raw[:M, :N].reshape(B, H, W, na, no).transpose(0, 3, 1, 2, 4)
    dec = dec[:M, :N].reshape(B, H, W, na, no).transpose(0, 3, 1, 2, 4)
    dec = dec.reshape(B, na * H * W, no)
    return raw, dec


def iauxdetect_forward(xs, prepared, strides, nc, na):
    nl = len(prepared)
    z, raws = [], []
    for i in range(nl):
        raw, dec = detect_decode_level(xs[i], prepared[i], strides[i], nc, na)
        raws.append(raw)
        z.append(dec)
    # TODO(synk): aux heads (m2 on xs[nl:]) and the training/export return branch are
    # not implemented; in eval mode they do not contribute to the returned values.
    return jnp.concatenate(z, axis=1), raws


# ------------------------------------------------------------------
# Deterministic parameter init (synthetic, mimics Conv2d + ImplicitA/ImplicitM)
# ------------------------------------------------------------------
def init_params(key, nc, na, ch_detect):
    no = nc + 5
    N = na * no
    params = {"w": [], "b": [], "ia": [], "im": []}
    keys = jax.random.split(key, 4 * len(ch_detect))
    idx = 0
    for c in ch_detect:
        params["w"].append(jax.random.normal(keys[idx], (N, c, 1, 1), jnp.float32)
                           / np.sqrt(c)); idx += 1
        params["b"].append(jax.random.normal(keys[idx], (N,), jnp.float32) * 0.01); idx += 1
        params["ia"].append(jax.random.normal(keys[idx], (c,), jnp.float32) * 0.02); idx += 1
        params["im"].append(1.0 + jax.random.normal(keys[idx], (N,), jnp.float32) * 0.02); idx += 1
    return params


# ------------------------------------------------------------------
# Pure-JAX reference (literal module math, f32) for correctness check
# ------------------------------------------------------------------
def ref_forward(xs, params, anchors, strides, nc, na):
    no = nc + 5
    nl = len(strides)
    z, raws = [], []
    for i in range(nl):
        x = xs[i] + params["ia"][i][None, :, None, None]        # ImplicitA
        t = lax.conv_general_dilated(
            x, params["w"][i], (1, 1), [(0, 0), (0, 0)],
            dimension_numbers=("NCHW", "OIHW", "NCHW"),
            precision=lax.Precision.HIGHEST)
        t = t + params["b"][i][None, :, None, None]
        t = t * params["im"][i][None, :, None, None]            # ImplicitM
        B, _, H, W = t.shape
        t = t.reshape(B, na, no, H, W).transpose(0, 1, 3, 4, 2)
        raws.append(t)
        y = jax.nn.sigmoid(t)
        yv, xv = jnp.meshgrid(jnp.arange(H), jnp.arange(W), indexing="ij")
        grid = jnp.stack([xv, yv], -1).astype(jnp.float32)[None, None]
        xy = (y[..., 0:2] * 2.0 - 0.5 + grid) * strides[i]
        wh = (y[..., 2:4] * 2.0) ** 2 * jnp.asarray(anchors[i]).reshape(1, na, 1, 1, 2)
        y = jnp.concatenate([xy, wh, y[..., 4:]], axis=-1)
        z.append(y.reshape(B, -1, no))
    return jnp.concatenate(z, 1), raws


# ------------------------------------------------------------------
if __name__ == "__main__":
    key = jax.random.PRNGKey(0)
    nc = 4
    anchors_cfg = [[10, 13, 16, 30, 33, 23],
                   [30, 61, 62, 45, 59, 119],
                   [116, 90, 156, 198, 373, 326]]
    nl = len(anchors_cfg)
    na = len(anchors_cfg[0]) // 2
    ch = (8, 16, 32, 8, 16, 32)          # detect channels (first nl) + aux channels
    strides = (8.0, 16.0, 32.0)          # IAuxDetect.stride is None until model assembly
    spatial = (16, 8, 4)
    anchors = np.asarray(anchors_cfg, np.float32).reshape(nl, na, 2)

    kparam, *kin = jax.random.split(key, 1 + 2 * nl)
    params = init_params(kparam, nc, na, ch[:nl])
    prepared = [prepare_level(params["w"][i], params["b"][i], params["ia"][i],
                              params["im"][i], anchors[i], nc, na)
                for i in range(nl)]
    xs = [jax.random.normal(kin[i], (2, ch[i], spatial[i % nl], spatial[i % nl]),
                            jnp.float32) for i in range(2 * nl)]

    pred, raws = iauxdetect_forward(xs, prepared, strides, nc, na)
    pred = jax.block_until_ready(pred)
    raws = [jax.block_until_ready(r) for r in raws]

    pred_ref, raws_ref = ref_forward(xs, params, anchors, strides, nc, na)
    np.testing.assert_allclose(np.asarray(pred), np.asarray(pred_ref),
                               rtol=5e-2, atol=5e-1)
    for r, rr in zip(raws, raws_ref):
        np.testing.assert_allclose(np.asarray(r), np.asarray(rr),
                                   rtol=5e-2, atol=5e-2)

    total = na * sum(s * s for s in spatial)
    assert pred.shape == (2, total, nc + 5)
    assert raws[0].shape == (2, na, 16, 16, nc + 5)
    assert raws[1].shape == (2, na, 8, 8, nc + 5)
    assert raws[2].shape == (2, na, 4, 4, nc + 5)

    print("KERNEL_OK")
</pallas_src>

<mosaic_0001>
module attributes {stable_mosaic.version = 11 : i64} {
  func.func @_detect_decode_kernel(%arg0: i32, %arg1: memref<512x128xbf16, #tpu.memory_space<vmem>>, %arg2: memref<128x128xbf16, #tpu.memory_space<vmem>>, %arg3: memref<1x128xf32, #tpu.memory_space<vmem>>, %arg4: memref<1x128xi32, #tpu.memory_space<vmem>>, %arg5: memref<1x128xf32, #tpu.memory_space<vmem>>, %arg6: memref<512x128xf32, #tpu.memory_space<vmem>>, %arg7: memref<512x128xf32, #tpu.memory_space<vmem>>) attributes {dimension_semantics = [#tpu.dimension_semantics<parallel>], iteration_bounds = array<i64: 1>, scalar_prefetch = 0 : i64, scratch_operands = 0 : i64, tpu.core_type = #tpu.core_type<tc>, window_params = [{transform_indices = @transform_0, window_bounds = array<i64: 512, 128>}, {pipeline_mode = #tpu.pipeline_mode<synchronous>, transform_indices = @transform_1, window_bounds = array<i64: 128, 128>}, {pipeline_mode = #tpu.pipeline_mode<synchronous>, transform_indices = @transform_2, window_bounds = array<i64: 1, 128>}, {pipeline_mode = #tpu.pipeline_mode<synchronous>, transform_indices = @transform_3, window_bounds = array<i64: 1, 128>}, {pipeline_mode = #tpu.pipeline_mode<synchronous>, transform_indices = @transform_4, window_bounds = array<i64: 1, 128>}, {transform_indices = @transform_5, window_bounds = array<i64: 512, 128>}, {transform_indices = @transform_6, window_bounds = array<i64: 512, 128>}]} {
    %c0 = arith.constant 0 : index
    %c0_0 = arith.constant 0 : index
    %0 = vector.load %arg1[%c0, %c0_0] : memref<512x128xbf16, #tpu.memory_space<vmem>>, vector<512x128xbf16>
    %c0_1 = arith.constant 0 : index
    %c0_2 = arith.constant 0 : index
    %1 = vector.load %arg2[%c0_1, %c0_2] : memref<128x128xbf16, #tpu.memory_space<vmem>>, vector<128x128xbf16>
    %cst = arith.constant dense<0.000000e+00> : vector<512x128xf32>
    %2 = tpu.matmul %0, %1, %cst {dimension_numbers = #tpu.dot_dimension_numbers<[1], [0], [0], [1], [0, 0, 1, 1], [], []>} : vector<512x128xbf16>, vector<128x128xbf16>, vector<512x128xf32> -> vector<512x128xf32>
    %c0_3 = arith.constant 0 : index
    %c0_4 = arith.constant 0 : index
    %3 = vector.load %arg3[%c0_3, %c0_4] : memref<1x128xf32, #tpu.memory_space<vmem>>, vector<1x128xf32>
    %4 = vector.broadcast %3 : vector<1x128xf32> to vector<512x128xf32>
    %5 = arith.addf %2, %4 : vector<512x128xf32>
    %c0_5 = arith.constant 0 : index
    %c0_6 = arith.constant 0 : index
    %6 = vector.load %arg6[%c0_5, %c0_6] : memref<512x128xf32, #tpu.memory_space<vmem>>, vector<512x128xf32>
    tpu.vector_store %arg6[%c0_5, %c0_6], %5 {strides = array<i32>} : memref<512x128xf32, #tpu.memory_space<vmem>>, vector<512x128xf32>,
    %7 = arith.negf %5 : vector<512x128xf32>
    %8 = math.exp %7 : vector<512x128xf32>
    %cst_7 = arith.constant 1.000000e+00 : f32
    %9 = vector.broadcast %cst_7 : f32 to vector<512x128xf32>
    %10 = arith.addf %9, %8 : vector<512x128xf32>
    %11 = arith.divf %9, %10 : vector<512x128xf32>
    %c0_8 = arith.constant 0 : index
    %c0_9 = arith.constant 0 : index
    %12 = vector.load %arg4[%c0_8, %c0_9] : memref<1x128xi32, #tpu.memory_space<vmem>>, vector<1x128xi32>
    %c512_i32 = arith.constant 512 : i32
    %13 = arith.muli %arg0, %c512_i32 : i32
    %14 = tpu.iota {dimensions = array<i32: 0>} : vector<512x1xi32>
    %15 = vector.broadcast %13 : i32 to vector<512x1xi32>
    %16 = arith.addi %15, %14 : vector<512x1xi32>
    %17 = arith.sitofp %16 : vector<512x1xi32> to vector<512x1xf32>
    %cst_10 = arith.constant 1.600000e+01 : f32
    %18 = vector.broadcast %cst_10 : f32 to vector<512x1xf32>
    %19 = arith.divf %17, %18 : vector<512x1xf32>
    %20 = math.floor %19 : vector<512x1xf32>
    %cst_11 = arith.constant 1.600000e+01 : f32
    %21 = vector.broadcast %cst_11 : f32 to vector<512x1xf32>
    %22 = arith.mulf %20, %21 : vector<512x1xf32>
    %23 = arith.subf %17, %22 : vector<512x1xf32>
    %cst_12 = arith.constant 1.600000e+01 : f32
    %24 = vector.broadcast %cst_12 : f32 to vector<512x1xf32>
    %25 = arith.divf %20, %24 : vector<512x1xf32>
    %26 = math.floor %25 : vector<512x1xf32>
    %cst_13 = arith.constant 1.600000e+01 : f32
    %27 = vector.broadcast %cst_13 : f32 to vector<512x1xf32>
    %28 = arith.mulf %26, %27 : vector<512x1xf32>
    %29 = arith.subf %20, %28 : vector<512x1xf32>
    %c0_i32 = arith.constant 0 : i32
    %30 = vector.broadcast %c0_i32 : i32 to vector<1x128xi32>
    %31 = arith.cmpi eq, %12, %30 : vector<1x128xi32>
    %32 = vector.shape_cast %31 : vector<1x128xi1> to vector<1x128xi1>
    %33 = vector.broadcast %32 : vector<1x128xi1> to vector<512x128xi1>
    %34 = vector.shape_cast %23 : vector<512x1xf32> to vector<512x1xf32>
    %35 = vector.broadcast %34 : vector<512x1xf32> to vector<512x128xf32>
    %36 = vector.shape_cast %29 : vector<512x1xf32> to vector<512x1xf32>
    %37 = vector.broadcast %36 : vector<512x1xf32> to vector<512x128xf32>
    %38 = arith.select %33, %35, %37 : vector<512x128xi1>, vector<512x128xf32>
    %cst_14 = arith.constant 2.000000e+00 : f32
    %39 = vector.broadcast %cst_14 : f32 to vector<512x128xf32>
    %40 = arith.mulf %11, %39 : vector<512x128xf32>
    %cst_15 = arith.constant 5.000000e-01 : f32
    %41 = vector.broadcast %cst_15 : f32 to vector<512x128xf32>
    %42 = arith.subf %40, %41 : vector<512x128xf32>
    %43 = arith.addf %42, %38 : vector<512x128xf32>
    %cst_16 = arith.constant 8.000000e+00 : f32
    %44 = vector.broadcast %cst_16 : f32 to vector<512x128xf32>
    %45 = arith.mulf %43, %44 : vector<512x128xf32>
    %46 = arith.mulf %40, %40 : vector<512x128xf32>
    %c0_17 = arith.constant 0 : index
    %c0_18 = arith.constant 0 : index
    %47 = vector.load %arg5[%c0_17, %c0_18] : memref<1x128xf32, #tpu.memory_space<vmem>>, vector<1x128xf32>
    %48 = vector.broadcast %47 : vector<1x128xf32> to vector<512x128xf32>
    %49 = arith.mulf %46, %48 : vector<512x128xf32>
    %c2_i32 = arith.constant 2 : i32
    %50 = vector.broadcast %c2_i32 : i32 to vector<1x128xi32>
    %51 = arith.cmpi slt, %12, %50 : vector<1x128xi32>
    %c2_i32_19 = arith.constant 2 : i32
    %52 = vector.broadcast %c2_i32_19 : i32 to vector<1x128xi32>
    %53 = arith.cmpi eq, %12, %52 : vector<1x128xi32>
    %54 = vector.shape_cast %53 : vector<1x128xi1> to vector<1x128xi1>
    %55 = vector.broadcast %54 : vector<1x128xi1> to vector<512x128xi1>
    %56 = arith.select %55, %49, %11 : vector<512x128xi1>, vector<512x128xf32>
    %57 = vector.shape_cast %51 : vector<1x128xi1> to vector<1x128xi1>
    %58 = vector.broadcast %57 : vector<1x128xi1> to vector<512x128xi1>
    %59 = arith.select %58, %45, %56 : vector<512x128xi1>, vector<512x128xf32>
    %c0_20 = arith.constant 0 : index
    %c0_21 = arith.constant 0 : index
    %60 = vector.load %arg7[%c0_20, %c0_21] : memref<512x128xf32, #tpu.memory_space<vmem>>, vector<512x128xf32>
    tpu.vector_store %arg7[%c0_20, %c0_21], %59 {strides = array<i32>} : memref<512x128xf32, #tpu.memory_space<vmem>>, vector<512x128xf32>,
    return
  }
  func.func @transform_0(%arg0: i32) -> (i32, i32) {
    %c0_i32 = arith.constant 0 : i32
    %c0_i32_0 = arith.constant 0 : i32
    return %arg0, %c0_i32 : i32, i32
  }
  func.func @transform_1(%arg0: i32) -> (i32, i32) {
    %c0_i32 = arith.constant 0 : i32
    %c0_i32_0 = arith.constant 0 : i32
    %c0_i32_1 = arith.constant 0 : i32
    return %c0_i32, %c0_i32_0 : i32, i32
  }
  func.func @transform_2(%arg0: i32) -> (i32, i32) {
    %c0_i32 = arith.constant 0 : i32
    %c0_i32_0 = arith.constant 0 : i32
    %c0_i32_1 = arith.constant 0 : i32
    return %c0_i32, %c0_i32_0 : i32, i32
  }
  func.func @transform_3(%arg0: i32) -> (i32, i32) {
    %c0_i32 = arith.constant 0 : i32
    %c0_i32_0 = arith.constant 0 : i32
    %c0_i32_1 = arith.constant 0 : i32
    return %c0_i32, %c0_i32_0 : i32, i32
  }
  func.func @transform_4(%arg0: i32) -> (i32, i32) {
    %c0_i32 = arith.constant 0 : i32
    %c0_i32_0 = arith.constant 0 : i32
    %c0_i32_1 = arith.constant 0 : i32
    return %c0_i32, %c0_i32_0 : i32, i32
  }
  func.func @transform_5(%arg0: i32) -> (i32, i32) {
    %c0_i32 = arith.constant 0 : i32
    %c0_i32_0 = arith.constant 0 : i32
    return %arg0, %c0_i32 : i32, i32
  }
  func.func @transform_6(%arg0: i32) -> (i32, i32) {
    %c0_i32 = arith.constant 0 : i32
    %c0_i32_0 = arith.constant 0 : i32
    return %arg0, %c0_i32 : i32, i32
  }
}

</mosaic_0001>

<llo_original>
// kernel: tpu_custom_call.1
$region0: #{tpu_custom_call.1}
  #allocation0 [shape = 'u32[]', space=smem, size = 0x4, offset = 0x4, fixed_abs, tag = 'smem constant byte address 0x4 - core index']
  #allocation1 [shape = 'u32[144,128]{1,0:T(1,128)}', space=vmem, size = 0x12000, scoped, tag = 'internal scratch']
  %s0 = inlined_call_operand.hbm [shape: bf16[512,128], index: 0, kind: input, shape index: {}]
  %s1 = inlined_call_operand.hbm [shape: bf16[128,128], index: 1, kind: input, shape index: {}]
  %s2 = inlined_call_operand.vmem [shape: f32[1,128], index: 2, kind: input, shape index: {}]
  %s3 = inlined_call_operand.vmem [shape: s32[1,128], index: 3, kind: input, shape index: {}]
  %s4 = inlined_call_operand.vmem [shape: f32[1,128], index: 4, kind: input, shape index: {}]
  %s5 = inlined_call_operand.hbm [shape: f32[512,128], index: 5, kind: output, shape index: {0}]
  %s6 = inlined_call_operand.hbm [shape: f32[512,128], index: 6, kind: output, shape index: {1}]
  %7 = xla_tuple %s5, %s6
  %s8 = sld [smem:[#allocation0]]
  $region46: #{tpu_custom_call.1} parent=0
    _
  %s10 = ssub.s32 1, %s8
  %s11 = scalar_select 0, %s10, %s8
  $region1: #{tpu_custom_call.1} parent=0
    #allocation2 [shape = 'u8[131072]{0}', space=vmem, size = 0x20000, scoped, tag = 'input window, operand 0, single buffered']
    #allocation3 [shape = 's32[1]{0}', space=sflag, size = 0x4, scoped, tag = 'scoped memory for tpu_custom_call.1']
    #allocation4 [shape = 's32[1]{0}', space=sflag, size = 0x4, scoped, tag = 'scoped memory for tpu_custom_call.1']
    #allocation5 [shape = 'u8[32768]{0}', space=vmem, size = 0x8000, scoped, tag = 'input window, operand 1, single buffered']
    #allocation6 [shape = 's32[1]{0}', space=sflag, size = 0x4, scoped, tag = 'scoped memory for tpu_custom_call.1']
    #allocation7 [shape = 'u8[262144]{0}', space=vmem, size = 0x40000, scoped, tag = 'output window, operand 0, single buffered']
    #allocation8 [shape = 'u8[262144]{0}', space=vmem, size = 0x40000, scoped, tag = 'output window, operand 1, single buffered']
    #allocation9 [shape = 's32[1]{0}', space=sflag, size = 0x4, scoped, tag = 'scoped memory for tpu_custom_call.1']
    %12 = vsyncpa [#allocation3], 0
    %13 = vsyncpa [#allocation6], 0
    %14 = vsyncpa [#allocation4], 0
    %15 = vsyncpa [#allocation9], 0
    // Predicated region
    $region2: #{tpu_custom_call.1} parent=1 // pred_check
      _
    $region3: #{tpu_custom_call.1} parent=1 // pred_check_branch
      %17 = sbr.rel (0) target = $region5
    $region4: #{tpu_custom_call.1} parent=1 // pred_region
      %s19 = ssub.s32 4096, 4096
      %20 = vsyncadd [#allocation3], %s19
      %s21 = sshll.u32 [#allocation2], 4
      %s22 = int_to_ptr.vmem [resolvable:$true] %s21
      %27 = dma.hbm_to_vmem [thread:$0]  %s0, 4096, %s22, [#allocation3], 64, 64, 4
    $region5: #{tpu_custom_call.1} parent=1 // pred_fallthru
      _
    // Predicated region
    $region6: #{tpu_custom_call.1} parent=1 // pred_check
      _
    $region7: #{tpu_custom_call.1} parent=1 // pred_check_branch
      %29 = sbr.rel (0) target = $region9
    $region8: #{tpu_custom_call.1} parent=1 // pred_region
      %s31 = ssub.s32 1024, 1024
      %32 = vsyncadd [#allocation6], %s31
      %s33 = sshll.u32 [#allocation5], 4
      %s34 = int_to_ptr.vmem [resolvable:$true] %s33
      %39 = dma.hbm_to_vmem [thread:$0]  %s1, 1024, %s34, [#allocation6], 64, 64, 4
    $region9: #{tpu_custom_call.1} parent=1 // pred_fallthru
      _
    // Predicated region
    $region10: #{tpu_custom_call.1} parent=1 // pred_check
      _
    $region11: #{tpu_custom_call.1} parent=1 // pred_check_branch
      %41 = sbr.rel (0) target = $region13
    $region12: #{tpu_custom_call.1} parent=1 // pred_region
      _
    $region13: #{tpu_custom_call.1} parent=1 // pred_fallthru
      _
    // Predicated region
    $region14: #{tpu_custom_call.1} parent=1 // pred_check
      _
    $region15: #{tpu_custom_call.1} parent=1 // pred_check_branch
      %43 = sbr.rel (0) target = $region17
    $region16: #{tpu_custom_call.1} parent=1 // pred_region
      _
    $region17: #{tpu_custom_call.1} parent=1 // pred_fallthru
      _
    // Predicated region
    $region18: #{tpu_custom_call.1} parent=1 // pred_check
      _
    $region19: #{tpu_custom_call.1} parent=1 // pred_check_branch
      %45 = sbr.rel (0) target = $region21
    $region20: #{tpu_custom_call.1} parent=1 // pred_region
      _
    $region21: #{tpu_custom_call.1} parent=1 // pred_fallthru
      _
    // Predicated region
    $region22: #{tpu_custom_call.1} parent=1 // pred_check
      _
    $region23: #{tpu_custom_call.1} parent=1 // pred_check_branch
      %47 = sbr.rel (0) target = $region25
    $region24: #{tpu_custom_call.1} parent=1 // pred_region
      %48 = dma.done [#allocation3], 4096
    $region25: #{tpu_custom_call.1} parent=1 // pred_fallthru
      _
    // Predicated region
    $region26: #{tpu_custom_call.1} parent=1 // pred_check
      _
    $region27: #{tpu_custom_call.1} parent=1 // pred_check_branch
      %50 = sbr.rel (0) target = $region29
    $region28: #{tpu_custom_call.1} parent=1 // pred_region
      %51 = dma.done [#allocation6], 1024
    $region29: #{tpu_custom_call.1} parent=1 // pred_fallthru
      _
    %v53 = vld [vmem:[#allocation2] sm:$0xf]
    %v54 = vld [vmem:[#allocation2 + $0x4] sm:$0xf]
    %v55 = vld [vmem:[#allocation2 + $0x8] sm:$0xf]
    %v56 = vld [vmem:[#allocation2 + $0xc] sm:$0xf]
    %v57 = vld [vmem:[#allocation2 + $0x10] sm:$0xf]
    %v58 = vld [vmem:[#allocation2 + $0x14] sm:$0xf]
    %v59 = vld [vmem:[#allocation2 + $0x18] sm:$0xf]
    %v60 = vld [vmem:[#allocation2 + $0x1c] sm:$0xf]
    %v61 = vld [vmem:[#allocation2 + $0x20] sm:$0xf]
    %v62 = vld [vmem:[#allocation2 + $0x24] sm:$0xf]
    %v63 = vld [vmem:[#allocation2 + $0x28] sm:$0xf]
    %v64 = vld [vmem:[#allocation2 + $0x2c] sm:$0xf]
    %v65 = vld [vmem:[#allocation2 + $0x30] sm:$0xf]
    %v66 = vld [vmem:[#allocation2 + $0x34] sm:$0xf]
    %v67 = vld [vmem:[#allocation2 + $0x38] sm:$0xf]
    %v68 = vld [vmem:[#allocation2 + $0x3c] sm:$0xf]
    %v69 = vld [vmem:[#allocation2 + $0x40] sm:$0xf]
    %v70 = vld [vmem:[#allocation2 + $0x44] sm:$0xf]
    %v71 = vld [vmem:[#allocation2 + $0x48] sm:$0xf]
    %v72 = vld [vmem:[#allocation2 + $0x4c] sm:$0xf]
    %v73 = vld [vmem:[#allocation2 + $0x50] sm:$0xf]
    %v74 = vld [vmem:[#allocation2 + $0x54] sm:$0xf]
    %v75 = vld [vmem:[#allocation2 + $0x58] sm:$0xf]
    %v76 = vld [vmem:[#allocation2 + $0x5c] sm:$0xf]
    %v77 = vld [vmem:[#allocation2 + $0x60] sm:$0xf]
    %v78 = vld [vmem:[#allocation2 + $0x64] sm:$0xf]
    %v79 = vld [vmem:[#allocation2 + $0x68] sm:$0xf]
    %v80 = vld [vmem:[#allocation2 + $0x6c] sm:$0xf]
    %v81 = vld [vmem:[#allocation2 + $0x70] sm:$0xf]
    %v82 = vld [vmem:[#allocation2 + $0x74] sm:$0xf]
    %v83 = vld [vmem:[#allocation2 + $0x78] sm:$0xf]
    %v84 = vld [vmem:[#allocation2 + $0x7c] sm:$0xf]
    %v85 = vld [vmem:[#allocation2 + $0x80] sm:$0xf]
    %v86 = vld [vmem:[#allocation2 + $0x84] sm:$0xf]
    %v87 = vld [vmem:[#allocation2 + $0x88] sm:$0xf]
    %v88 = vld [vmem:[#allocation2 + $0x8c] sm:$0xf]
    %v89 = vld [vmem:[#allocation2 + $0x90] sm:$0xf]
    %v90 = vld [vmem:[#allocation2 + $0x94] sm:$0xf]
    %v91 = vld [vmem:[#allocation2 + $0x98] sm:$0xf]
    %v92 = vld [vmem:[#allocation2 + $0x9c] sm:$0xf]
    %v93 = vld [vmem:[#allocation2 + $0xa0] sm:$0xf]
    %v94 = vld [vmem:[#allocation2 + $0xa4] sm:$0xf]
    %v95 = vld [vmem:[#allocation2 + $0xa8] sm:$0xf]
    %v96 = vld [vmem:[#allocation2 + $0xac] sm:$0xf]
    %v97 = vld [vmem:[#allocation2 + $0xb0] sm:$0xf]
    %v98 = vld [vmem:[#allocation2 + $0xb4] sm:$0xf]
    %v99 = vld [vmem:[#allocation2 + $0xb8] sm:$0xf]
    %v100 = vld [vmem:[#allocation2 + $0xbc] sm:$0xf]
    %v101 = vld [vmem:[#allocation2 + $0xc0] sm:$0xf]
    %v102 = vld [vmem:[#allocation2 + $0xc4] sm:$0xf]
    %v103 = vld [vmem:[#allocation2 + $0xc8] sm:$0xf]
    %v104 = vld [vmem:[#allocation2 + $0xcc] sm:$0xf]
    %v105 = vld [vmem:[#allocation2 + $0xd0] sm:$0xf]
    %v106 = vld [vmem:[#allocation2 + $0xd4] sm:$0xf]
    %v107 = vld [vmem:[#allocation2 + $0xd8] sm:$0xf]
    %v108 = vld [vmem:[#allocation2 + $0xdc] sm:$0xf]
    %v109 = vld [vmem:[#allocation2 + $0xe0] sm:$0xf]
    %v110 = vld [vmem:[#allocation2 + $0xe4] sm:$0xf]
    %v111 = vld [vmem:[#allocation2 + $0xe8] sm:$0xf]
    %v112 = vld [vmem:[#allocation2 + $0xec] sm:$0xf]
    %v113 = vld [vmem:[#allocation2 + $0xf0] sm:$0xf]
    %v114 = vld [vmem:[#allocation2 + $0xf4] sm:$0xf]
    %v115 = vld [vmem:[#allocation2 + $0xf8] sm:$0xf]
    %v116 = vld [vmem:[#allocation2 + $0xfc] sm:$0xf]
    %v117 = vld [vmem:[#allocation5] sm:$0xf]
    %v118 = vld [vmem:[#allocation5 + $0x4] sm:$0xf]
    %v119 = vld [vmem:[#allocation5 + $0x8] sm:$0xf]
    %v120 = vld [vmem:[#allocation5 + $0xc] sm:$0xf]
    %v121 = vld [vmem:[#allocation5 + $0x10] sm:$0xf]
    %v122 = vld [vmem:[#allocation5 + $0x14] sm:$0xf]
    %v123 = vld [vmem:[#allocation5 + $0x18] sm:$0xf]
    %v124 = vld [vmem:[#allocation5 + $0x1c] sm:$0xf]
    %v125 = vld [vmem:[#allocation5 + $0x20] sm:$0xf]
    %v126 = vld [vmem:[#allocation5 + $0x24] sm:$0xf]
    %v127 = vld [vmem:[#allocation5 + $0x28] sm:$0xf]
    %v128 = vld [vmem:[#allocation5 + $0x2c] sm:$0xf]
    %v129 = vld [vmem:[#allocation5 + $0x30] sm:$0xf]
    %v130 = vld [vmem:[#allocation5 + $0x34] sm:$0xf]
    %v131 = vld [vmem:[#allocation5 + $0x38] sm:$0xf]
    %v132 = vld [vmem:[#allocation5 + $0x3c] sm:$0xf]
    %v133 = vld [vmem:[%s2] sm:$0x1]
    %v135 = vlaneseq
    %v136 = vshrl.u32 %v135, 7
    %v137 = vsub.s32 0, %v136
    %v138 = vrot.slane %v133, %v137
    %v204 = vunpack.c.l.b16 %v53
    %v205 = vunpack.c.l.b16 %v54
    %v206 = vunpack.c.l.b16 %v55
    %v207 = vunpack.c.l.b16 %v56
    %v208 = vunpack.c.l.b16 %v57
    %v209 = vunpack.c.l.b16 %v58
    %v210 = vunpack.c.l.b16 %v59
    %v211 = vunpack.c.l.b16 %v60
    %v212 = vunpack.c.l.b16 %v61
    %v213 = vunpack.c.l.b16 %v62
    %v214 = vunpack.c.l.b16 %v63
    %v215 = vunpack.c.l.b16 %v64
    %v216 = vunpack.c.l.b16 %v65
    %v217 = vunpack.c.l.b16 %v66
    %v218 = vunpack.c.l.b16 %v67
    %v219 = vunpack.c.l.b16 %v68
    %v220 = vunpack.c.l.b16 %v69
    %v221 = vunpack.c.l.b16 %v70
    %v222 = vunpack.c.l.b16 %v71
    %v223 = vunpack.c.l.b16 %v72
    %v224 = vunpack.c.l.b16 %v73
    %v225 = vunpack.c.l.b16 %v74
    %v226 = vunpack.c.l.b16 %v75
    %v227 = vunpack.c.l.b16 %v76
    %v228 = vunpack.c.l.b16 %v77
    %v229 = vunpack.c.l.b16 %v78
    %v230 = vunpack.c.l.b16 %v79
    %v231 = vunpack.c.l.b16 %v80
    %v232 = vunpack.c.l.b16 %v81
    %v233 = vunpack.c.l.b16 %v82
    %v234 = vunpack.c.l.b16 %v83
    %v235 = vunpack.c.l.b16 %v84
    %v236 = vunpack.c.l.b16 %v85
    %v237 = vunpack.c.l.b16 %v86
    %v238 = vunpack.c.l.b16 %v87
    %v239 = vunpack.c.l.b16 %v88
    %v240 = vunpack.c.l.b16 %v89
    %v241 = vunpack.c.l.b16 %v90
    %v242 = vunpack.c.l.b16 %v91
    %v243 = vunpack.c.l.b16 %v92
    %v244 = vunpack.c.l.b16 %v93
    %v245 = vunpack.c.l.b16 %v94
    %v246 = vunpack.c.l.b16 %v95
    %v247 = vunpack.c.l.b16 %v96
    %v248 = vunpack.c.l.b16 %v97
    %v249 = vunpack.c.l.b16 %v98
    %v250 = vunpack.c.l.b16 %v99
    %v251 = vunpack.c.l.b16 %v100
    %v252 = vunpack.c.l.b16 %v101
    %v253 = vunpack.c.l.b16 %v102
    %v254 = vunpack.c.l.b16 %v103
    %v255 = vunpack.c.l.b16 %v104
    %v256 = vunpack.c.l.b16 %v105
    %v257 = vunpack.c.l.b16 %v106
    %v258 = vunpack.c.l.b16 %v107
    %v259 = vunpack.c.l.b16 %v108
    %v260 = vunpack.c.l.b16 %v109
    %v261 = vunpack.c.l.b16 %v110
    %v262 = vunpack.c.l.b16 %v111
    %v263 = vunpack.c.l.b16 %v112
    %v264 = vunpack.c.l.b16 %v113
    %v265 = vunpack.c.l.b16 %v114
    %v266 = vunpack.c.l.b16 %v115
    %v267 = vunpack.c.l.b16 %v116
    %v268 = vpack.c.b16 %v205, %v204
    %v269 = vpack.c.b16 %v207, %v206
    %v270 = vpack.c.b16 %v209, %v208
    %v271 = vpack.c.b16 %v211, %v210
    %v272 = vpack.c.b16 %v213, %v212
    %v273 = vpack.c.b16 %v215, %v214
    %v274 = vpack.c.b16 %v217, %v216
    %v275 = vpack.c.b16 %v219, %v218
    %v276 = vpack.c.b16 %v221, %v220
    %v277 = vpack.c.b16 %v223, %v222
    %v278 = vpack.c.b16 %v225, %v224
    %v279 = vpack.c.b16 %v227, %v226
    %v280 = vpack.c.b16 %v229, %v228
    %v281 = vpack.c.b16 %v231, %v230
    %v282 = vpack.c.b16 %v233, %v232
    %v283 = vpack.c.b16 %v235, %v234
    %v284 = vpack.c.b16 %v237, %v236
    %v285 = vpack.c.b16 %v239, %v238
    %v286 = vpack.c.b16 %v241, %v240
    %v287 = vpack.c.b16 %v243, %v242
    %v288 = vpack.c.b16 %v245, %v244
    %v289 = vpack.c.b16 %v247, %v246
    %v290 = vpack.c.b16 %v249, %v248
    %v291 = vpack.c.b16 %v251, %v250
    %v292 = vpack.c.b16 %v253, %v252
    %v293 = vpack.c.b16 %v255, %v254
    %v294 = vpack.c.b16 %v257, %v256
    %v295 = vpack.c.b16 %v259, %v258
    %v296 = vpack.c.b16 %v261, %v260
    %v297 = vpack.c.b16 %v263, %v262
    %v298 = vpack.c.b16 %v265, %v264
    %v299 = vpack.c.b16 %v267, %v266
    %v348 = vunpack.c.l.b16 %v117
    %v349 = vunpack.c.l.b16 %v118
    %v350 = vunpack.c.l.b16 %v119
    %v351 = vunpack.c.l.b16 %v120
    %v352 = vunpack.c.l.b16 %v121
    %v353 = vunpack.c.l.b16 %v122
    %v354 = vunpack.c.l.b16 %v123
    %v355 = vunpack.c.l.b16 %v124
    %v356 = vunpack.c.l.b16 %v125
    %v357 = vunpack.c.l.b16 %v126
    %v358 = vunpack.c.l.b16 %v127
    %v359 = vunpack.c.l.b16 %v128
    %v360 = vunpack.c.l.b16 %v129
    %v361 = vunpack.c.l.b16 %v130
    %v362 = vunpack.c.l.b16 %v131
    %v363 = vunpack.c.l.b16 %v132
    %v364 = vpack.c.b16 %v349, %v348
    %v365 = vpack.c.b16 %v351, %v350
    %v366 = vpack.c.b16 %v353, %v352
    %v367 = vpack.c.b16 %v355, %v354
    %v368 = vpack.c.b16 %v357, %v356
    %v369 = vpack.c.b16 %v359, %v358
    %v370 = vpack.c.b16 %v361, %v360
    %v371 = vpack.c.b16 %v363, %v362
    %380 = vmatprep.subr.bf16.mxu0 0
    %381 = vmatpush1.bf16.msra.mxu0 %v364
    %382 = vmatprep.subr.bf16.mxu0 0
    %383 = vmatpush1.bf16.msra.mxu0 %v365
    %384 = vmatprep.subr.bf16.mxu0 0
    %385 = vmatpush1.bf16.msra.mxu0 %v366
    %386 = vmatprep.subr.bf16.mxu0 0
    %387 = vmatpush1.bf16.msra.mxu0 %v367
    %388 = vmatprep.subr.bf16.mxu0 0
    %389 = vmatpush1.bf16.msra.mxu0 %v368
    %390 = vmatprep.subr.bf16.mxu0 0
    %391 = vmatpush1.bf16.msra.mxu0 %v369
    %392 = vmatprep.subr.bf16.mxu0 0
    %393 = vmatpush1.bf16.msra.mxu0 %v370
    %394 = vmatprep.subr.bf16.mxu0 0
    %395 = vmatpush1.bf16.msra.mxu0 %v371
    %396 = vmatprep.subr.bf16.mxu0 0
    %397 = vmatpush1.bf16.msra.mxu0 0
    %398 = vmatprep.subr.bf16.mxu0 0
    %399 = vmatpush1.bf16.msra.mxu0 0
    %400 = vmatprep.subr.bf16.mxu0 0
    %401 = vmatpush1.bf16.msra.mxu0 0
    %402 = vmatprep.subr.bf16.mxu0 0
    %403 = vmatpush1.bf16.msra.mxu0 0
    %404 = vmatprep.subr.bf16.mxu0 0
    %405 = vmatpush1.bf16.msra.mxu0 0
    %406 = vmatprep.subr.bf16.mxu0 0
    %407 = vmatpush1.bf16.msra.mxu0 0
    %408 = vmatprep.subr.bf16.mxu0 0
    %409 = vmatpush1.bf16.msra.mxu0 0
    %410 = vmatprep.subr.bf16.mxu0 0
    %411 = vmatpush1.bf16.msra.mxu0 0
    %412 = vmatprep.mubr.bf16.mxu0 0
    %413 = vmatmul.mubr.bf16.gmra.mrb[0].mxu0 %v268
    %v414 = vpop.f32.mrb[0].mxu0
    %v415 = vadd.f32 %v138, %v414
    %v416 = vpop.f32.mrb[0].mxu0
    %v417 = vpop.f32.mrb[0].mxu0
    %v418 = vadd.f32 %v138, %v417
    %v419 = vpop.f32.mrb[0].mxu0
    %420 = vmatprep.mubr.bf16.mxu0 0
    %421 = vmatmul.mubr.bf16.gmra.mrb[0].mxu0 %v269
    %v422 = vpop.f32.mrb[0].mxu0
    %v423 = vadd.f32 %v138, %v422
    %v424 = vpop.f32.mrb[0].mxu0
    %v425 = vpop.f32.mrb[0].mxu0
    %v426 = vadd.f32 %v138, %v425
    %v427 = vpop.f32.mrb[0].mxu0
    %428 = vmatprep.mubr.bf16.mxu0 0
    %429 = vmatmul.mubr.bf16.gmra.mrb[0].mxu0 %v270
    %v430 = vpop.f32.mrb[0].mxu0
    %v431 = vadd.f32 %v138, %v430
    %v432 = vpop.f32.mrb[0].mxu0
    %v433 = vpop.f32.mrb[0].mxu0
    %v434 = vadd.f32 %v138, %v433
    %v435 = vpop.f32.mrb[0].mxu0
    %436 = vmatprep.mubr.bf16.mxu0 0
    %437 = vmatmul.mubr.bf16.gmra.mrb[0].mxu0 %v271
    %v438 = vpop.f32.mrb[0].mxu0
    %v439 = vadd.f32 %v138, %v438
    %v440 = vpop.f32.mrb[0].mxu0
    %v441 = vpop.f32.mrb[0].mxu0
    %v442 = vadd.f32 %v138, %v441
    %v443 = vpop.f32.mrb[0].mxu0
    %444 = vmatprep.mubr.bf16.mxu0 0
    %445 = vmatmul.mubr.bf16.gmra.mrb[0].mxu0 %v272
    %v446 = vpop.f32.mrb[0].mxu0
    %v447 = vadd.f32 %v138, %v446
    %v448 = vpop.f32.mrb[0].mxu0
    %v449 = vpop.f32.mrb[0].mxu0
    %v450 = vadd.f32 %v138, %v449
    %v451 = vpop.f32.mrb[0].mxu0
    %452 = vmatprep.mubr.bf16.mxu0 0
    %453 = vmatmul.mubr.bf16.gmra.mrb[0].mxu0 %v273
    %v454 = vpop.f32.mrb[0].mxu0
    %v455 = vadd.f32 %v138, %v454
    %v456 = vpop.f32.mrb[0].mxu0
    %v457 = vpop.f32.mrb[0].mxu0
    %v458 = vadd.f32 %v138, %v457
    %v459 = vpop.f32.mrb[0].mxu0
    %460 = vmatprep.mubr.bf16.mxu0 0
    %461 = vmatmul.mubr.bf16.gmra.mrb[0].mxu0 %v274
    %v462 = vpop.f32.mrb[0].mxu0
    %v463 = vadd.f32 %v138, %v462
    %v464 = vpop.f32.mrb[0].mxu0
    %v465 = vpop.f32.mrb[0].mxu0
    %v466 = vadd.f32 %v138, %v465
    %v467 = vpop.f32.mrb[0].mxu0
    %468 = vmatprep.mubr.bf16.mxu0 0
    %469 = vmatmul.mubr.bf16.gmra.mrb[0].mxu0 %v275
    %v470 = vpop.f32.mrb[0].mxu0
    %v471 = vadd.f32 %v138, %v470
    %v472 = vpop.f32.mrb[0].mxu0
    %v473 = vpop.f32.mrb[0].mxu0
    %v474 = vadd.f32 %v138, %v473
    %v475 = vpop.f32.mrb[0].mxu0
    %476 = vmatprep.mubr.bf16.mxu0 0
    %477 = vmatmul.mubr.bf16.gmra.mrb[0].mxu0 %v276
    %v478 = vpop.f32.mrb[0].mxu0
    %v479 = vadd.f32 %v138, %v478
    %v480 = vpop.f32.mrb[0].mxu0
    %v481 = vpop.f32.mrb[0].mxu0
    %v482 = vadd.f32 %v138, %v481
    %v483 = vpop.f32.mrb[0].mxu0
    %484 = vmatprep.mubr.bf16.mxu0 0
    %485 = vmatmul.mubr.bf16.gmra.mrb[0].mxu0 %v277
    %v486 = vpop.f32.mrb[0].mxu0
    %v487 = vadd.f32 %v138, %v486
    %v488 = vpop.f32.mrb[0].mxu0
    %v489 = vpop.f32.mrb[0].mxu0
    %v490 = vadd.f32 %v138, %v489
    %v491 = vpop.f32.mrb[0].mxu0
    %492 = vmatprep.mubr.bf16.mxu0 0
    %493 = vmatmul.mubr.bf16.gmra.mrb[0].mxu0 %v278
    %v494 = vpop.f32.mrb[0].mxu0
    %v495 = vadd.f32 %v138, %v494
    %v496 = vpop.f32.mrb[0].mxu0
    %v497 = vpop.f32.mrb[0].mxu0
    %v498 = vadd.f32 %v138, %v497
    %v499 = vpop.f32.mrb[0].mxu0
    %500 = vmatprep.mubr.bf16.mxu0 0
    %501 = vmatmul.mubr.bf16.gmra.mrb[0].mxu0 %v279
    %v502 = vpop.f32.mrb[0].mxu0
    %v503 = vadd.f32 %v138, %v502
    %v504 = vpop.f32.mrb[0].mxu0
    %v505 = vpop.f32.mrb[0].mxu0
    %v506 = vadd.f32 %v138, %v505
    %v507 = vpop.f32.mrb[0].mxu0
    %508 = vmatprep.mubr.bf16.mxu0 0
    %509 = vmatmul.mubr.bf16.gmra.mrb[0].mxu0 %v280
    %v510 = vpop.f32.mrb[0].mxu0
    %v511 = vadd.f32 %v138, %v510
    %v512 = vpop.f32.mrb[0].mxu0
    %v513 = vpop.f32.mrb[0].mxu0
    %v514 = vadd.f32 %v138, %v513
    %v515 = vpop.f32.mrb[0].mxu0
    %516 = vmatprep.mubr.bf16.mxu0 0
    %517 = vmatmul.mubr.bf16.gmra.mrb[0].mxu0 %v281
    %v518 = vpop.f32.mrb[0].mxu0
    %v519 = vadd.f32 %v138, %v518
    %v520 = vpop.f32.mrb[0].mxu0
    %v521 = vpop.f32.mrb[0].mxu0
    %v522 = vadd.f32 %v138, %v521
    %v523 = vpop.f32.mrb[0].mxu0
    %524 = vmatprep.mubr.bf16.mxu0 0
    %525 = vmatmul.mubr.bf16.gmra.mrb[0].mxu0 %v282
    %v526 = vpop.f32.mrb[0].mxu0
    %v527 = vadd.f32 %v138, %v526
    %v528 = vpop.f32.mrb[0].mxu0
    %v529 = vpop.f32.mrb[0].mxu0
    %v530 = vadd.f32 %v138, %v529
    %v531 = vpop.f32.mrb[0].mxu0
    %532 = vmatprep.mubr.bf16.mxu0 0
    %533 = vmatmul.mubr.bf16.gmra.mrb[0].mxu0 %v283
    %v534 = vpop.f32.mrb[0].mxu0
    %v535 = vadd.f32 %v138, %v534
    %v536 = vpop.f32.mrb[0].mxu0
    %v537 = vpop.f32.mrb[0].mxu0
    %v538 = vadd.f32 %v138, %v537
    %v539 = vpop.f32.mrb[0].mxu0
    %540 = vmatprep.mubr.bf16.mxu0 0
    %541 = vmatmul.mubr.bf16.gmra.mrb[0].mxu0 %v284
    %v542 = vpop.f32.mrb[0].mxu0
    %v543 = vadd.f32 %v138, %v542
    %v544 = vpop.f32.mrb[0].mxu0
    %v545 = vpop.f32.mrb[0].mxu0
    %v546 = vadd.f32 %v138, %v545
    %v547 = vpop.f32.mrb[0].mxu0
    %548 = vmatprep.mubr.bf16.mxu0 0
    %549 = vmatmul.mubr.bf16.gmra.mrb[0].mxu0 %v285
    %v550 = vpop.f32.mrb[0].mxu0
    %v551 = vadd.f32 %v138, %v550
    %v552 = vpop.f32.mrb[0].mxu0
    %v553 = vpop.f32.mrb[0].mxu0
    %v554 = vadd.f32 %v138, %v553
    %v555 = vpop.f32.mrb[0].mxu0
    %556 = vmatprep.mubr.bf16.mxu0 0
    %557 = vmatmul.mubr.bf16.gmra.mrb[0].mxu0 %v286
    %v558 = vpop.f32.mrb[0].mxu0
    %v559 = vadd.f32 %v138, %v558
    %v560 = vpop.f32.mrb[0].mxu0
    %v561 = vpop.f32.mrb[0].mxu0
    %v562 = vadd.f32 %v138, %v561
    %v563 = vpop.f32.mrb[0].mxu0
    %564 = vmatprep.mubr.bf16.mxu0 0
    %565 = vmatmul.mubr.bf16.gmra.mrb[0].mxu0 %v287
    %v566 = vpop.f32.mrb[0].mxu0
    %v567 = vadd.f32 %v138, %v566
    %v568 = vpop.f32.mrb[0].mxu0
    %v569 = vpop.f32.mrb[0].mxu0
    %v570 = vadd.f32 %v138, %v569
    %v571 = vpop.f32.mrb[0].mxu0
    %572 = vmatprep.mubr.bf16.mxu0 0
    %573 = vmatmul.mubr.bf16.gmra.mrb[0].mxu0 %v288
    %v574 = vpop.f32.mrb[0].mxu0
    %v575 = vadd.f32 %v138, %v574
    %v576 = vpop.f32.mrb[0].mxu0
    %v577 = vpop.f32.mrb[0].mxu0
    %v578 = vadd.f32 %v138, %v577
    %v579 = vpop.f32.mrb[0].mxu0
    %580 = vmatprep.mubr.bf16.mxu0 0
    %581 = vmatmul.mubr.bf16.gmra.mrb[0].mxu0 %v289
    %v582 = vpop.f32.mrb[0].mxu0
    %v583 = vadd.f32 %v138, %v582
    %v584 = vpop.f32.mrb[0].mxu0
    %v585 = vpop.f32.mrb[0].mxu0
    %v586 = vadd.f32 %v138, %v585
    %v587 = vpop.f32.mrb[0].mxu0
    %588 = vmatprep.mubr.bf16.mxu0 0
    %589 = vmatmul.mubr.bf16.gmra.mrb[0].mxu0 %v290
    %v590 = vpop.f32.mrb[0].mxu0
    %v591 = vadd.f32 %v138, %v590
    %v592 = vpop.f32.mrb[0].mxu0
    %v593 = vpop.f32.mrb[0].mxu0
    %v594 = vadd.f32 %v138, %v593
    %v595 = vpop.f32.mrb[0].mxu0
    %596 = vmatprep.mubr.bf16.mxu0 0
    %597 = vmatmul.mubr.bf16.gmra.mrb[0].mxu0 %v291
    %v598 = vpop.f32.mrb[0].mxu0
    %v599 = vadd.f32 %v138, %v598
    %v600 = vpop.f32.mrb[0].mxu0
    %v601 = vpop.f32.mrb[0].mxu0
    %v602 = vadd.f32 %v138, %v601
    %v603 = vpop.f32.mrb[0].mxu0
    %604 = vmatprep.mubr.bf16.mxu0 0
    %605 = vmatmul.mubr.bf16.gmra.mrb[0].mxu0 %v292
    %v606 = vpop.f32.mrb[0].mxu0
    %v607 = vadd.f32 %v138, %v606
    %v608 = vpop.f32.mrb[0].mxu0
    %v609 = vpop.f32.mrb[0].mxu0
    %v610 = vadd.f32 %v138, %v609
    %v611 = vpop.f32.mrb[0].mxu0
    %612 = vmatprep.mubr.bf16.mxu0 0
    %613 = vmatmul.mubr.bf16.gmra.mrb[0].mxu0 %v293
    %v614 = vpop.f32.mrb[0].mxu0
    %v615 = vadd.f32 %v138, %v614
    %v616 = vpop.f32.mrb[0].mxu0
    %v617 = vpop.f32.mrb[0].mxu0
    %v618 = vadd.f32 %v138, %v617
    %v619 = vpop.f32.mrb[0].mxu0
    %620 = vmatprep.mubr.bf16.mxu0 0
    %621 = vmatmul.mubr.bf16.gmra.mrb[0].mxu0 %v294
    %v622 = vpop.f32.mrb[0].mxu0
    %v623 = vadd.f32 %v138, %v622
    %v624 = vpop.f32.mrb[0].mxu0
    %v625 = vpop.f32.mrb[0].mxu0
    %v626 = vadd.f32 %v138, %v625
    %v627 = vpop.f32.mrb[0].mxu0
    %628 = vmatprep.mubr.bf16.mxu0 0
    %629 = vmatmul.mubr.bf16.gmra.mrb[0].mxu0 %v295
    %v630 = vpop.f32.mrb[0].mxu0
    %v631 = vadd.f32 %v138, %v630
    %v632 = vpop.f32.mrb[0].mxu0
    %v633 = vpop.f32.mrb[0].mxu0
    %v634 = vadd.f32 %v138, %v633
    %v635 = vpop.f32.mrb[0].mxu0
    %636 = vmatprep.mubr.bf16.mxu0 0
    %637 = vmatmul.mubr.bf16.gmra.mrb[0].mxu0 %v296
    %v638 = vpop.f32.mrb[0].mxu0
    %v639 = vadd.f32 %v138, %v638
    %v640 = vpop.f32.mrb[0].mxu0
    %v641 = vpop.f32.mrb[0].mxu0
    %v642 = vadd.f32 %v138, %v641
    %v643 = vpop.f32.mrb[0].mxu0
    %644 = vmatprep.mubr.bf16.mxu0 0
    %645 = vmatmul.mubr.bf16.gmra.mrb[0].mxu0 %v297
    %v646 = vpop.f32.mrb[0].mxu0
    %v647 = vadd.f32 %v138, %v646
    %v648 = vpop.f32.mrb[0].mxu0
    %v649 = vpop.f32.mrb[0].mxu0
    %v650 = vadd.f32 %v138, %v649
    %v651 = vpop.f32.mrb[0].mxu0
    %652 = vmatprep.mubr.bf16.mxu0 0
    %653 = vmatmul.mubr.bf16.gmra.mrb[0].mxu0 %v298
    %v654 = vpop.f32.mrb[0].mxu0
    %v655 = vadd.f32 %v138, %v654
    %v656 = vpop.f32.mrb[0].mxu0
    %v657 = vpop.f32.mrb[0].mxu0
    %v658 = vadd.f32 %v138, %v657
    %v659 = vpop.f32.mrb[0].mxu0
    %660 = vmatprep.mubr.bf16.mxu0 0
    %661 = vmatmul.mubr.bf16.gmra.mrb[0].mxu0 %v299
    %v662 = vpop.f32.mrb[0].mxu0
    %v663 = vadd.f32 %v138, %v662
    %v664 = vpop.f32.mrb[0].mxu0
    %v665 = vpop.f32.mrb[0].mxu0
    %v666 = vadd.f32 %v138, %v665
    %v667 = vpop.f32.mrb[0].mxu0
    %668 = vdwg.mxu0
    %669 = vst [vmem:[#allocation7] sm:$0xff] %v415
    %670 = vst [vmem:[#allocation7 + $0x8] sm:$0xff] %v418
    %671 = vst [vmem:[#allocation7 + $0x10] sm:$0xff] %v423
    %672 = vst [vmem:[#allocation7 + $0x18] sm:$0xff] %v426
    %673 = vst [vmem:[#allocation7 + $0x20] sm:$0xff] %v431
    %674 = vst [vmem:[#allocation7 + $0x28] sm:$0xff] %v434
    %675 = vst [vmem:[#allocation7 + $0x30] sm:$0xff] %v439
    %676 = vst [vmem:[#allocation7 + $0x38] sm:$0xff] %v442
    %677 = vst [vmem:[#allocation7 + $0x40] sm:$0xff] %v447
    %678 = vst [vmem:[#allocation7 + $0x48] sm:$0xff] %v450
    %679 = vst [vmem:[#allocation7 + $0x50] sm:$0xff] %v455
    %680 = vst [vmem:[#allocation7 + $0x58] sm:$0xff] %v458
    %681 = vst [vmem:[#allocation7 + $0x60] sm:$0xff] %v463
    %682 = vst [vmem:[#allocation7 + $0x68] sm:$0xff] %v466
    %683 = vst [vmem:[#allocation7 + $0x70] sm:$0xff] %v471
    %684 = vst [vmem:[#allocation7 + $0x78] sm:$0xff] %v474
    %685 = vst [vmem:[#allocation7 + $0x80] sm:$0xff] %v479
    %686 = vst [vmem:[#allocation7 + $0x88] sm:$0xff] %v482
    %687 = vst [vmem:[#allocation7 + $0x90] sm:$0xff] %v487
    %688 = vst [vmem:[#allocation7 + $0x98] sm:$0xff] %v490
    %689 = vst [vmem:[#allocation7 + $0xa0] sm:$0xff] %v495
    %690 = vst [vmem:[#allocation7 + $0xa8] sm:$0xff] %v498
    %691 = vst [vmem:[#allocation7 + $0xb0] sm:$0xff] %v503
    %692 = vst [vmem:[#allocation7 + $0xb8] sm:$0xff] %v506
    %693 = vst [vmem:[#allocation7 + $0xc0] sm:$0xff] %v511
    %694 = vst [vmem:[#allocation7 + $0xc8] sm:$0xff] %v514
    %695 = vst [vmem:[#allocation7 + $0xd0] sm:$0xff] %v519
    %696 = vst [vmem:[#allocation7 + $0xd8] sm:$0xff] %v522
    %697 = vst [vmem:[#allocation7 + $0xe0] sm:$0xff] %v527
    %698 = vst [vmem:[#allocation7 + $0xe8] sm:$0xff] %v530
    %699 = vst [vmem:[#allocation7 + $0xf0] sm:$0xff] %v535
    %700 = vst [vmem:[#allocation7 + $0xf8] sm:$0xff] %v538
    %701 = vst [vmem:[#allocation7 + $0x100] sm:$0xff] %v543
    %702 = vst [vmem:[#allocation7 + $0x108] sm:$0xff] %v546
    %703 = vst [vmem:[#allocation7 + $0x110] sm:$0xff] %v551
    %704 = vst [vmem:[#allocation7 + $0x118] sm:$0xff] %v554
    %705 = vst [vmem:[#allocation7 + $0x120] sm:$0xff] %v559
    %706 = vst [vmem:[#allocation7 + $0x128] sm:$0xff] %v562
    %707 = vst [vmem:[#allocation7 + $0x130] sm:$0xff] %v567
    %708 = vst [vmem:[#allocation7 + $0x138] sm:$0xff] %v570
    %709 = vst [vmem:[#allocation7 + $0x140] sm:$0xff] %v575
    %710 = vst [vmem:[#allocation7 + $0x148] sm:$0xff] %v578
    %711 = vst [vmem:[#allocation7 + $0x150] sm:$0xff] %v583
    %712 = vst [vmem:[#allocation7 + $0x158] sm:$0xff] %v586
    %713 = vst [vmem:[#allocation7 + $0x160] sm:$0xff] %v591
    %714 = vst [vmem:[#allocation7 + $0x168] sm:$0xff] %v594
    %715 = vst [vmem:[#allocation7 + $0x170] sm:$0xff] %v599
    %716 = vst [vmem:[#allocation7 + $0x178] sm:$0xff] %v602
    %717 = vst [vmem:[#allocation7 + $0x180] sm:$0xff] %v607
    %718 = vst [vmem:[#allocation7 + $0x188] sm:$0xff] %v610
    %719 = vst [vmem:[#allocation7 + $0x190] sm:$0xff] %v615
    %720 = vst [vmem:[#allocation7 + $0x198] sm:$0xff] %v618
    %721 = vst [vmem:[#allocation7 + $0x1a0] sm:$0xff] %v623
    %722 = vst [vmem:[#allocation7 + $0x1a8] sm:$0xff] %v626
    %723 = vst [vmem:[#allocation7 + $0x1b0] sm:$0xff] %v631
    %724 = vst [vmem:[#allocation7 + $0x1b8] sm:$0xff] %v634
    %725 = vst [vmem:[#allocation7 + $0x1c0] sm:$0xff] %v639
    %726 = vst [vmem:[#allocation7 + $0x1c8] sm:$0xff] %v642
    %727 = vst [vmem:[#allocation7 + $0x1d0] sm:$0xff] %v647
    %728 = vst [vmem:[#allocation7 + $0x1d8] sm:$0xff] %v650
    %729 = vst [vmem:[#allocation7 + $0x1e0] sm:$0xff] %v655
    %730 = vst [vmem:[#allocation7 + $0x1e8] sm:$0xff] %v658
    %731 = vst [vmem:[#allocation7 + $0x1f0] sm:$0xff] %v663
    %732 = vst [vmem:[#allocation7 + $0x1f8] sm:$0xff] %v666
    %v733 = vxor.u32 %v415, 2147483648
    %v734 = vxor.u32 %v418, 2147483648
    %v735 = vxor.u32 %v423, 2147483648
    %v736 = vxor.u32 %v426, 2147483648
    %v737 = vxor.u32 %v431, 2147483648
    %v738 = vxor.u32 %v434, 2147483648
    %v739 = vxor.u32 %v439, 2147483648
    %v740 = vxor.u32 %v442, 2147483648
    %v741 = vxor.u32 %v447, 2147483648
    %v742 = vxor.u32 %v450, 2147483648
    %v743 = vxor.u32 %v455, 2147483648
    %v744 = vxor.u32 %v458, 2147483648
    %v745 = vxor.u32 %v463, 2147483648
    %v746 = vxor.u32 %v466, 2147483648
    %v747 = vxor.u32 %v471, 2147483648
    %v748 = vxor.u32 %v474, 2147483648
    %v749 = vxor.u32 %v479, 2147483648
    %v750 = vxor.u32 %v482, 2147483648
    %v751 = vxor.u32 %v487, 2147483648
    %v752 = vxor.u32 %v490, 2147483648
    %v753 = vxor.u32 %v495, 2147483648
    %v754 = vxor.u32 %v498, 2147483648
    %v755 = vxor.u32 %v503, 2147483648
    %v756 = vxor.u32 %v506, 2147483648
    %v757 = vxor.u32 %v511, 2147483648
    %v758 = vxor.u32 %v514, 2147483648
    %v759 = vxor.u32 %v519, 2147483648
    %v760 = vxor.u32 %v522, 2147483648
    %v761 = vxor.u32 %v527, 2147483648
    %v762 = vxor.u32 %v530, 2147483648
    %v763 = vxor.u32 %v535, 2147483648
    %v764 = vxor.u32 %v538, 2147483648
    %v765 = vxor.u32 %v543, 2147483648
    %v766 = vxor.u32 %v546, 2147483648
    %v767 = vxor.u32 %v551, 2147483648
    %v768 = vxor.u32 %v554, 2147483648
    %v769 = vxor.u32 %v559, 2147483648
    %v770 = vxor.u32 %v562, 2147483648
    %v771 = vxor.u32 %v567, 2147483648
    %v772 = vxor.u32 %v570, 2147483648
    %v773 = vxor.u32 %v575, 2147483648
    %v774 = vxor.u32 %v578, 2147483648
    %v775 = vxor.u32 %v583, 2147483648
    %v776 = vxor.u32 %v586, 2147483648
    %v777 = vxor.u32 %v591, 2147483648
    %v778 = vxor.u32 %v594, 2147483648
    %v779 = vxor.u32 %v599, 2147483648
    %v780 = vxor.u32 %v602, 2147483648
    %v781 = vxor.u32 %v607, 2147483648
    %v782 = vxor.u32 %v610, 2147483648
    %v783 = vxor.u32 %v615, 2147483648
    %v784 = vxor.u32 %v618, 2147483648
    %v785 = vxor.u32 %v623, 2147483648
    %v786 = vxor.u32 %v626, 2147483648
    %v787 = vxor.u32 %v631, 2147483648
    %v788 = vxor.u32 %v634, 2147483648
    %v789 = vxor.u32 %v639, 2147483648
    %v790 = vxor.u32 %v642, 2147483648
    %v791 = vxor.u32 %v647, 2147483648
    %v792 = vxor.u32 %v650, 2147483648
    %v793 = vxor.u32 %v655, 2147483648
    %v794 = vxor.u32 %v658, 2147483648
    %v795 = vxor.u32 %v663, 2147483648
    %v796 = vxor.u32 %v666, 2147483648
    %v797 = vmul.f32 %v733, 1.442695
    %v798 = vpow.pop %v797
    %v799 = vmul.f32 %v734, 1.442695
    %v800 = vpow.pop %v799
    %v801 = vmul.f32 %v735, 1.442695
    %v802 = vpow.pop %v801
    %v803 = vmul.f32 %v736, 1.442695
    %v804 = vpow.pop %v803
    %v805 = vmul.f32 %v737, 1.442695
    %v806 = vpow.pop %v805
    %v807 = vmul.f32 %v738, 1.442695
    %v808 = vpow.pop %v807
    %v809 = vmul.f32 %v739, 1.442695
    %v810 = vpow.pop %v809
    %v811 = vmul.f32 %v740, 1.442695
    %v812 = vpow.pop %v811
    %v813 = vmul.f32 %v741, 1.442695
    %v814 = vpow.pop %v813
    %v815 = vmul.f32 %v742, 1.442695
    %v816 = vpow.pop %v815
    %v817 = vmul.f32 %v743, 1.442695
    %v818 = vpow.pop %v817
    %v819 = vmul.f32 %v744, 1.442695
    %v820 = vpow.pop %v819
    %v821 = vmul.f32 %v745, 1.442695
    %v822 = vpow.pop %v821
    %v823 = vmul.f32 %v746, 1.442695
    %v824 = vpow.pop %v823
    %v825 = vmul.f32 %v747, 1.442695
    %v826 = vpow.pop %v825
    %v827 = vmul.f32 %v748, 1.442695
    %v828 = vpow.pop %v827
    %v829 = vmul.f32 %v749, 1.442695
    %v830 = vpow.pop %v829
    %v831 = vmul.f32 %v750, 1.442695
    %v832 = vpow.pop %v831
    %v833 = vmul.f32 %v751, 1.442695
    %v834 = vpow.pop %v833
    %v835 = vmul.f32 %v752, 1.442695
    %v836 = vpow.pop %v835
    %v837 = vmul.f32 %v753, 1.442695
    %v838 = vpow.pop %v837
    %v839 = vmul.f32 %v754, 1.442695
    %v840 = vpow.pop %v839
    %v841 = vmul.f32 %v755, 1.442695
    %v842 = vpow.pop %v841
    %v843 = vmul.f32 %v756, 1.442695
    %v844 = vpow.pop %v843
    %v845 = vmul.f32 %v757, 1.442695
    %v846 = vpow.pop %v845
    %v847 = vmul.f32 %v758, 1.442695
    %v848 = vpow.pop %v847
    %v849 = vmul.f32 %v759, 1.442695
    %v850 = vpow.pop %v849
    %v851 = vmul.f32 %v760, 1.442695
    %v852 = vpow.pop %v851
    %v853 = vmul.f32 %v761, 1.442695
    %v854 = vpow.pop %v853
    %v855 = vmul.f32 %v762, 1.442695
    %v856 = vpow.pop %v855
    %v857 = vmul.f32 %v763, 1.442695
    %v858 = vpow.pop %v857
    %v859 = vmul.f32 %v764, 1.442695
    %v860 = vpow.pop %v859
    %v861 = vmul.f32 %v765, 1.442695
    %v862 = vpow.pop %v861
    %v863 = vmul.f32 %v766, 1.442695
    %v864 = vpow.pop %v863
    %v865 = vmul.f32 %v767, 1.442695
    %v866 = vpow.pop %v865
    %v867 = vmul.f32 %v768, 1.442695
    %v868 = vpow.pop %v867
    %v869 = vmul.f32 %v769, 1.442695
    %v870 = vpow.pop %v869
    %v871 = vmul.f32 %v770, 1.442695
    %v872 = vpow.pop %v871
    %v873 = vmul.f32 %v771, 1.442695
    %v874 = vpow.pop %v873
    %v875 = vmul.f32 %v772, 1.442695
    %v876 = vpow.pop %v875
    %v877 = vmul.f32 %v773, 1.442695
    %v878 = vpow.pop %v877
    %v879 = vmul.f32 %v774, 1.442695
    %v880 = vpow.pop %v879
    %v881 = vmul.f32 %v775, 1.442695
    %v882 = vpow.pop %v881
    %v883 = vmul.f32 %v776, 1.442695
    %v884 = vpow.pop %v883
    %v885 = vmul.f32 %v777, 1.442695
    %v886 = vpow.pop %v885
    %v887 = vmul.f32 %v778, 1.442695
    %v888 = vpow.pop %v887
    %v889 = vmul.f32 %v779, 1.442695
    %v890 = vpow.pop %v889
    %v891 = vmul.f32 %v780, 1.442695
    %v892 = vpow.pop %v891
    %v893 = vmul.f32 %v781, 1.442695
    %v894 = vpow.pop %v893
    %v895 = vmul.f32 %v782, 1.442695
    %v896 = vpow.pop %v895
    %v897 = vmul.f32 %v783, 1.442695
    %v898 = vpow.pop %v897
    %v899 = vmul.f32 %v784, 1.442695
    %v900 = vpow.pop %v899
    %v901 = vmul.f32 %v785, 1.442695
    %v902 = vpow.pop %v901
    %v903 = vmul.f32 %v786, 1.442695
    %v904 = vpow.pop %v903
    %v905 = vmul.f32 %v787, 1.442695
    %v906 = vpow.pop %v905
    %v907 = vmul.f32 %v788, 1.442695
    %v908 = vpow.pop %v907
    %v909 = vmul.f32 %v789, 1.442695
    %v910 = vpow.pop %v909
    %v911 = vmul.f32 %v790, 1.442695
    %v912 = vpow.pop %v911
    %v913 = vmul.f32 %v791, 1.442695
    %v914 = vpow.pop %v913
    %v915 = vmul.f32 %v792, 1.442695
    %v916 = vpow.pop %v915
    %v917 = vmul.f32 %v793, 1.442695
    %v918 = vpow.pop %v917
    %v919 = vmul.f32 %v794, 1.442695
    %v920 = vpow.pop %v919
    %v921 = vmul.f32 %v795, 1.442695
    %v922 = vpow.pop %v921
    %v923 = vmul.f32 %v796, 1.442695
    %v924 = vpow.pop %v923
    %v925 = vadd.f32 %v798, 1.0
    %v926 = vadd.f32 %v800, 1.0
    %v927 = vadd.f32 %v802, 1.0
    %v928 = vadd.f32 %v804, 1.0
    %v929 = vadd.f32 %v806, 1.0
    %v930 = vadd.f32 %v808, 1.0
    %v931 = vadd.f32 %v810, 1.0
    %v932 = vadd.f32 %v812, 1.0
    %v933 = vadd.f32 %v814, 1.0
    %v934 = vadd.f32 %v816, 1.0
    %v935 = vadd.f32 %v818, 1.0
    %v936 = vadd.f32 %v820, 1.0
    %v937 = vadd.f32 %v822, 1.0
    %v938 = vadd.f32 %v824, 1.0
    %v939 = vadd.f32 %v826, 1.0
    %v940 = vadd.f32 %v828, 1.0
    %v941 = vadd.f32 %v830, 1.0
    %v942 = vadd.f32 %v832, 1.0
    %v943 = vadd.f32 %v834, 1.0
    %v944 = vadd.f32 %v836, 1.0
    %v945 = vadd.f32 %v838, 1.0
    %v946 = vadd.f32 %v840, 1.0
    %v947 = vadd.f32 %v842, 1.0
    %v948 = vadd.f32 %v844, 1.0
    %v949 = vadd.f32 %v846, 1.0
    %v950 = vadd.f32 %v848, 1.0
    %v951 = vadd.f32 %v850, 1.0
    %v952 = vadd.f32 %v852, 1.0
    %v953 = vadd.f32 %v854, 1.0
    %v954 = vadd.f32 %v856, 1.0
    %v955 = vadd.f32 %v858, 1.0
    %v956 = vadd.f32 %v860, 1.0
    %v957 = vadd.f32 %v862, 1.0
    %v958 = vadd.f32 %v864, 1.0
    %v959 = vadd.f32 %v866, 1.0
    %v960 = vadd.f32 %v868, 1.0
    %v961 = vadd.f32 %v870, 1.0
    %v962 = vadd.f32 %v872, 1.0
    %v963 = vadd.f32 %v874, 1.0
    %v964 = vadd.f32 %v876, 1.0
    %v965 = vadd.f32 %v878, 1.0
    %v966 = vadd.f32 %v880, 1.0
    %v967 = vadd.f32 %v882, 1.0
    %v968 = vadd.f32 %v884, 1.0
    %v969 = vadd.f32 %v886, 1.0
    %v970 = vadd.f32 %v888, 1.0
    %v971 = vadd.f32 %v890, 1.0
    %v972 = vadd.f32 %v892, 1.0
    %v973 = vadd.f32 %v894, 1.0
    %v974 = vadd.f32 %v896, 1.0
    %v975 = vadd.f32 %v898, 1.0
    %v976 = vadd.f32 %v900, 1.0
    %v977 = vadd.f32 %v902, 1.0
    %v978 = vadd.f32 %v904, 1.0
    %v979 = vadd.f32 %v906, 1.0
    %v980 = vadd.f32 %v908, 1.0
    %v981 = vadd.f32 %v910, 1.0
    %v982 = vadd.f32 %v912, 1.0
    %v983 = vadd.f32 %v914, 1.0
    %v984 = vadd.f32 %v916, 1.0
    %v985 = vadd.f32 %v918, 1.0
    %v986 = vadd.f32 %v920, 1.0
    %v987 = vadd.f32 %v922, 1.0
    %v988 = vadd.f32 %v924, 1.0
    %v989 = vrcp.pop %v925
    %v990 = vmul.f32 1.0, %v989
    %v991 = vrcp.pop %v926
    %v992 = vmul.f32 1.0, %v991
    %v993 = vrcp.pop %v927
    %v994 = vmul.f32 1.0, %v993
    %v995 = vrcp.pop %v928
    %v996 = vmul.f32 1.0, %v995
    %v997 = vrcp.pop %v929
    %v998 = vmul.f32 1.0, %v997
    %v999 = vrcp.pop %v930
    %v1000 = vmul.f32 1.0, %v999
    %v1001 = vrcp.pop %v931
    %v1002 = vmul.f32 1.0, %v1001
    %v1003 = vrcp.pop %v932
    %v1004 = vmul.f32 1.0, %v1003
    %v1005 = vrcp.pop %v933
    %v1006 = vmul.f32 1.0, %v1005
    %v1007 = vrcp.pop %v934
    %v1008 = vmul.f32 1.0, %v1007
    %v1009 = vrcp.pop %v935
    %v1010 = vmul.f32 1.0, %v1009
    %v1011 = vrcp.pop %v936
    %v1012 = vmul.f32 1.0, %v1011
    %v1013 = vrcp.pop %v937
    %v1014 = vmul.f32 1.0, %v1013
    %v1015 = vrcp.pop %v938
    %v1016 = vmul.f32 1.0, %v1015
    %v1017 = vrcp.pop %v939
    %v1018 = vmul.f32 1.0, %v1017
    %v1019 = vrcp.pop %v940
    %v1020 = vmul.f32 1.0, %v1019
    %v1021 = vrcp.pop %v941
    %v1022 = vmul.f32 1.0, %v1021
    %v1023 = vrcp.pop %v942
    %v1024 = vmul.f32 1.0, %v1023
    %v1025 = vrcp.pop %v943
    %v1026 = vmul.f32 1.0, %v1025
    %v1027 = vrcp.pop %v944
    %v1028 = vmul.f32 1.0, %v1027
    %v1029 = vrcp.pop %v945
    %v1030 = vmul.f32 1.0, %v1029
    %v1031 = vrcp.pop %v946
    %v1032 = vmul.f32 1.0, %v1031
    %v1033 = vrcp.pop %v947
    %v1034 = vmul.f32 1.0, %v1033
    %v1035 = vrcp.pop %v948
    %v1036 = vmul.f32 1.0, %v1035
    %v1037 = vrcp.pop %v949
    %v1038 = vmul.f32 1.0, %v1037
    %v1039 = vrcp.pop %v950
    %v1040 = vmul.f32 1.0, %v1039
    %v1041 = vrcp.pop %v951
    %v1042 = vmul.f32 1.0, %v1041
    %v1043 = vrcp.pop %v952
    %v1044 = vmul.f32 1.0, %v1043
    %v1045 = vrcp.pop %v953
    %v1046 = vmul.f32 1.0, %v1045
    %v1047 = vrcp.pop %v954
    %v1048 = vmul.f32 1.0, %v1047
    %v1049 = vrcp.pop %v955
    %v1050 = vmul.f32 1.0, %v1049
    %v1051 = vrcp.pop %v956
    %v1052 = vmul.f32 1.0, %v1051
    %v1053 = vrcp.pop %v957
    %v1054 = vmul.f32 1.0, %v1053
    %v1055 = vrcp.pop %v958
    %v1056 = vmul.f32 1.0, %v1055
    %v1057 = vrcp.pop %v959
    %v1058 = vmul.f32 1.0, %v1057
    %v1059 = vrcp.pop %v960
    %v1060 = vmul.f32 1.0, %v1059
    %v1061 = vrcp.pop %v961
    %v1062 = vmul.f32 1.0, %v1061
    %v1063 = vrcp.pop %v962
    %v1064 = vmul.f32 1.0, %v1063
    %v1065 = vrcp.pop %v963
    %v1066 = vmul.f32 1.0, %v1065
    %v1067 = vrcp.pop %v964
    %v1068 = vmul.f32 1.0, %v1067
    %v1069 = vrcp.pop %v965
    %v1070 = vmul.f32 1.0, %v1069
    %v1071 = vrcp.pop %v966
    %v1072 = vmul.f32 1.0, %v1071
    %v1073 = vrcp.pop %v967
    %v1074 = vmul.f32 1.0, %v1073
    %v1075 = vrcp.pop %v968
    %v1076 = vmul.f32 1.0, %v1075
    %v1077 = vrcp.pop %v969
    %v1078 = vmul.f32 1.0, %v1077
    %v1079 = vrcp.pop %v970
    %v1080 = vmul.f32 1.0, %v1079
    %v1081 = vrcp.pop %v971
    %v1082 = vmul.f32 1.0, %v1081
    %v1083 = vrcp.pop %v972
    %v1084 = vmul.f32 1.0, %v1083
    %v1085 = vrcp.pop %v973
    %v1086 = vmul.f32 1.0, %v1085
    %v1087 = vrcp.pop %v974
    %v1088 = vmul.f32 1.0, %v1087
    %v1089 = vrcp.pop %v975
    %v1090 = vmul.f32 1.0, %v1089
    %v1091 = vrcp.pop %v976
    %v1092 = vmul.f32 1.0, %v1091
    %v1093 = vrcp.pop %v977
    %v1094 = vmul.f32 1.0, %v1093
    %v1095 = vrcp.pop %v978
    %v1096 = vmul.f32 1.0, %v1095
    %v1097 = vrcp.pop %v979
    %v1098 = vmul.f32 1.0, %v1097
    %v1099 = vrcp.pop %v980
    %v1100 = vmul.f32 1.0, %v1099
    %v1101 = vrcp.pop %v981
    %v1102 = vmul.f32 1.0, %v1101
    %v1103 = vrcp.pop %v982
    %v1104 = vmul.f32 1.0, %v1103
    %v1105 = vrcp.pop %v983
    %v1106 = vmul.f32 1.0, %v1105
    %v1107 = vrcp.pop %v984
    %v1108 = vmul.f32 1.0, %v1107
    %v1109 = vrcp.pop %v985
    %v1110 = vmul.f32 1.0, %v1109
    %v1111 = vrcp.pop %v986
    %v1112 = vmul.f32 1.0, %v1111
    %v1113 = vrcp.pop %v987
    %v1114 = vmul.f32 1.0, %v1113
    %v1115 = vrcp.pop %v988
    %v1116 = vmul.f32 1.0, %v1115
    %v1117 = vld [vmem:[%s3] sm:$0x1]
    %s1118 = smul.u32 0, 512
    %v1119 = vlaneseq
    %v1120 = vshrl.u32 %v1119, 7
    %v1121 = vadd.s32 %v1120, 8
    %v1122 = vadd.s32 %v1120, 16
    %v1123 = vadd.s32 %v1120, 24
    %v1124 = vadd.s32 %v1120, 32
    %v1125 = vadd.s32 %v1120, 40
    %v1126 = vadd.s32 %v1120, 48
    %v1127 = vadd.s32 %v1120, 56
    %v1128 = vadd.s32 %v1120, 64
    %v1129 = vadd.s32 %v1120, 72
    %v1130 = vadd.s32 %v1120, 80
    %v1131 = vadd.s32 %v1120, 88
    %v1132 = vadd.s32 %v1120, 96
    %v1133 = vadd.s32 %v1120, 104
    %v1134 = vadd.s32 %v1120, 112
    %v1135 = vadd.s32 %v1120, 120
    %v1136 = vadd.s32 %v1120, 128
    %v1137 = vadd.s32 %v1120, 136
    %v1138 = vadd.s32 %v1120, 144
    %v1139 = vadd.s32 %v1120, 152
    %v1140 = vadd.s32 %v1120, 160
    %v1141 = vadd.s32 %v1120, 168
    %v1142 = vadd.s32 %v1120, 176
    %v1143 = vadd.s32 %v1120, 184
    %v1144 = vadd.s32 %v1120, 192
    %v1145 = vadd.s32 %v1120, 200
    %v1146 = vadd.s32 %v1120, 208
    %v1147 = vadd.s32 %v1120, 216
    %v1148 = vadd.s32 %v1120, 224
    %v1149 = vadd.s32 %v1120, 232
    %v1150 = vadd.s32 %v1120, 240
    %v1151 = vadd.s32 %v1120, 248
    %v1152 = vadd.s32 %v1120, 256
    %v1153 = vadd.s32 %v1120, 264
    %v1154 = vadd.s32 %v1120, 272
    %v1155 = vadd.s32 %v1120, 280
    %v1156 = vadd.s32 %v1120, 288
    %v1157 = vadd.s32 %v1120, 296
    %v1158 = vadd.s32 %v1120, 304
    %v1159 = vadd.s32 %v1120, 312
    %v1160 = vadd.s32 %v1120, 320
    %v1161 = vadd.s32 %v1120, 328
    %v1162 = vadd.s32 %v1120, 336
    %v1163 = vadd.s32 %v1120, 344
    %v1164 = vadd.s32 %v1120, 352
    %v1165 = vadd.s32 %v1120, 360
    %v1166 = vadd.s32 %v1120, 368
    %v1167 = vadd.s32 %v1120, 376
    %v1168 = vadd.s32 %v1120, 384
    %v1169 = vadd.s32 %v1120, 392
    %v1170 = vadd.s32 %v1120, 400
    %v1171 = vadd.s32 %v1120, 408
    %v1172 = vadd.s32 %v1120, 416
    %v1173 = vadd.s32 %v1120, 424
    %v1174 = vadd.s32 %v1120, 432
    %v1175 = vadd.s32 %v1120, 440
    %v1176 = vadd.s32 %v1120, 448
    %v1177 = vadd.s32 %v1120, 456
    %v1178 = vadd.s32 %v1120, 464
    %v1179 = vadd.s32 %v1120, 472
    %v1180 = vadd.s32 %v1120, 480
    %v1181 = vadd.s32 %v1120, 488
    %v1182 = vadd.s32 %v1120, 496
    %v1183 = vadd.s32 %v1120, 504
    %v1184 = vstv %s1118
    %v1185 = vadd.s32 %v1184, %v1120
    %v1186 = vadd.s32 %v1184, %v1121
    %v1187 = vadd.s32 %v1184, %v1122
    %v1188 = vadd.s32 %v1184, %v1123
    %v1189 = vadd.s32 %v1184, %v1124
    %v1190 = vadd.s32 %v1184, %v1125
    %v1191 = vadd.s32 %v1184, %v1126
    %v1192 = vadd.s32 %v1184, %v1127
    %v1193 = vadd.s32 %v1184, %v1128
    %v1194 = vadd.s32 %v1184, %v1129
    %v1195 = vadd.s32 %v1184, %v1130
    %v1196 = vadd.s32 %v1184, %v1131
    %v1197 = vadd.s32 %v1184, %v1132
    %v1198 = vadd.s32 %v1184, %v1133
    %v1199 = vadd.s32 %v1184, %v1134
    %v1200 = vadd.s32 %v1184, %v1135
    %v1201 = vadd.s32 %v1184, %v1136
    %v1202 = vadd.s32 %v1184, %v1137
    %v1203 = vadd.s32 %v1184, %v1138
    %v1204 = vadd.s32 %v1184, %v1139
    %v1205 = vadd.s32 %v1184, %v1140
    %v1206 = vadd.s32 %v1184, %v1141
    %v1207 = vadd.s32 %v1184, %v1142
    %v1208 = vadd.s32 %v1184, %v1143
    %v1209 = vadd.s32 %v1184, %v1144
    %v1210 = vadd.s32 %v1184, %v1145
    %v1211 = vadd.s32 %v1184, %v1146
    %v1212 = vadd.s32 %v1184, %v1147
    %v1213 = vadd.s32 %v1184, %v1148
    %v1214 = vadd.s32 %v1184, %v1149
    %v1215 = vadd.s32 %v1184, %v1150
    %v1216 = vadd.s32 %v1184, %v1151
    %v1217 = vadd.s32 %v1184, %v1152
    %v1218 = vadd.s32 %v1184, %v1153
    %v1219 = vadd.s32 %v1184, %v1154
    %v1220 = vadd.s32 %v1184, %v1155
    %v1221 = vadd.s32 %v1184, %v1156
    %v1222 = vadd.s32 %v1184, %v1157
    %v1223 = vadd.s32 %v1184, %v1158
    %v1224 = vadd.s32 %v1184, %v1159
    %v1225 = vadd.s32 %v1184, %v1160
    %v1226 = vadd.s32 %v1184, %v1161
    %v1227 = vadd.s32 %v1184, %v1162
    %v1228 = vadd.s32 %v1184, %v1163
    %v1229 = vadd.s32 %v1184, %v1164
    %v1230 = vadd.s32 %v1184, %v1165
    %v1231 = vadd.s32 %v1184, %v1166
    %v1232 = vadd.s32 %v1184, %v1167
    %v1233 = vadd.s32 %v1184, %v1168
    %v1234 = vadd.s32 %v1184, %v1169
    %v1235 = vadd.s32 %v1184, %v1170
    %v1236 = vadd.s32 %v1184, %v1171
    %v1237 = vadd.s32 %v1184, %v1172
    %v1238 = vadd.s32 %v1184, %v1173
    %v1239 = vadd.s32 %v1184, %v1174
    %v1240 = vadd.s32 %v1184, %v1175
    %v1241 = vadd.s32 %v1184, %v1176
    %v1242 = vadd.s32 %v1184, %v1177
    %v1243 = vadd.s32 %v1184, %v1178
    %v1244 = vadd.s32 %v1184, %v1179
    %v1245 = vadd.s32 %v1184, %v1180
    %v1246 = vadd.s32 %v1184, %v1181
    %v1247 = vadd.s32 %v1184, %v1182
    %v1248 = vadd.s32 %v1184, %v1183
    %v1249 = vcvt.s32.f32 %v1185
    %v1250 = vcvt.s32.f32 %v1186
    %v1251 = vcvt.s32.f32 %v1187
    %v1252 = vcvt.s32.f32 %v1188
    %v1253 = vcvt.s32.f32 %v1189
    %v1254 = vcvt.s32.f32 %v1190
    %v1255 = vcvt.s32.f32 %v1191
    %v1256 = vcvt.s32.f32 %v1192
    %v1257 = vcvt.s32.f32 %v1193
    %v1258 = vcvt.s32.f32 %v1194
    %v1259 = vcvt.s32.f32 %v1195
    %v1260 = vcvt.s32.f32 %v1196
    %v1261 = vcvt.s32.f32 %v1197
    %v1262 = vcvt.s32.f32 %v1198
    %v1263 = vcvt.s32.f32 %v1199
    %v1264 = vcvt.s32.f32 %v1200
    %v1265 = vcvt.s32.f32 %v1201
    %v1266 = vcvt.s32.f32 %v1202
    %v1267 = vcvt.s32.f32 %v1203
    %v1268 = vcvt.s32.f32 %v1204
    %v1269 = vcvt.s32.f32 %v1205
    %v1270 = vcvt.s32.f32 %v1206
    %v1271 = vcvt.s32.f32 %v1207
    %v1272 = vcvt.s32.f32 %v1208
    %v1273 = vcvt.s32.f32 %v1209
    %v1274 = vcvt.s32.f32 %v1210
    %v1275 = vcvt.s32.f32 %v1211
    %v1276 = vcvt.s32.f32 %v1212
    %v1277 = vcvt.s32.f32 %v1213
    %v1278 = vcvt.s32.f32 %v1214
    %v1279 = vcvt.s32.f32 %v1215
    %v1280 = vcvt.s32.f32 %v1216
    %v1281 = vcvt.s32.f32 %v1217
    %v1282 = vcvt.s32.f32 %v1218
    %v1283 = vcvt.s32.f32 %v1219
    %v1284 = vcvt.s32.f32 %v1220
    %v1285 = vcvt.s32.f32 %v1221
    %v1286 = vcvt.s32.f32 %v1222
    %v1287 = vcvt.s32.f32 %v1223
    %v1288 = vcvt.s32.f32 %v1224
    %v1289 = vcvt.s32.f32 %v1225
    %v1290 = vcvt.s32.f32 %v1226
    %v1291 = vcvt.s32.f32 %v1227
    %v1292 = vcvt.s32.f32 %v1228
    %v1293 = vcvt.s32.f32 %v1229
    %v1294 = vcvt.s32.f32 %v1230
    %v1295 = vcvt.s32.f32 %v1231
    %v1296 = vcvt.s32.f32 %v1232
    %v1297 = vcvt.s32.f32 %v1233
    %v1298 = vcvt.s32.f32 %v1234
    %v1299 = vcvt.s32.f32 %v1235
    %v1300 = vcvt.s32.f32 %v1236
    %v1301 = vcvt.s32.f32 %v1237
    %v1302 = vcvt.s32.f32 %v1238
    %v1303 = vcvt.s32.f32 %v1239
    %v1304 = vcvt.s32.f32 %v1240
    %v1305 = vcvt.s32.f32 %v1241
    %v1306 = vcvt.s32.f32 %v1242
    %v1307 = vcvt.s32.f32 %v1243
    %v1308 = vcvt.s32.f32 %v1244
    %v1309 = vcvt.s32.f32 %v1245
    %v1310 = vcvt.s32.f32 %v1246
    %v1311 = vcvt.s32.f32 %v1247
    %v1312 = vcvt.s32.f32 %v1248
    %v1313 = vrcp.pop 16.0
    %v1314 = vmul.f32 %v1249, %v1313
    %v1315 = vmul.f32 %v1250, %v1313
    %v1316 = vmul.f32 %v1251, %v1313
    %v1317 = vmul.f32 %v1252, %v1313
    %v1318 = vmul.f32 %v1253, %v1313
    %v1319 = vmul.f32 %v1254, %v1313
    %v1320 = vmul.f32 %v1255, %v1313
    %v1321 = vmul.f32 %v1256, %v1313
    %v1322 = vmul.f32 %v1257, %v1313
    %v1323 = vmul.f32 %v1258, %v1313
    %v1324 = vmul.f32 %v1259, %v1313
    %v1325 = vmul.f32 %v1260, %v1313
    %v1326 = vmul.f32 %v1261, %v1313
    %v1327 = vmul.f32 %v1262, %v1313
    %v1328 = vmul.f32 %v1263, %v1313
    %v1329 = vmul.f32 %v1264, %v1313
    %v1330 = vmul.f32 %v1265, %v1313
    %v1331 = vmul.f32 %v1266, %v1313
    %v1332 = vmul.f32 %v1267, %v1313
    %v1333 = vmul.f32 %v1268, %v1313
    %v1334 = vmul.f32 %v1269, %v1313
    %v1335 = vmul.f32 %v1270, %v1313
    %v1336 = vmul.f32 %v1271, %v1313
    %v1337 = vmul.f32 %v1272, %v1313
    %v1338 = vmul.f32 %v1273, %v1313
    %v1339 = vmul.f32 %v1274, %v1313
    %v1340 = vmul.f32 %v1275, %v1313
    %v1341 = vmul.f32 %v1276, %v1313
    %v1342 = vmul.f32 %v1277, %v1313
    %v1343 = vmul.f32 %v1278, %v1313
    %v1344 = vmul.f32 %v1279, %v1313
    %v1345 = vmul.f32 %v1280, %v1313
    %v1346 = vmul.f32 %v1281, %v1313
    %v1347 = vmul.f32 %v1282, %v1313
    %v1348 = vmul.f32 %v1283, %v1313
    %v1349 = vmul.f32 %v1284, %v1313
    %v1350 = vmul.f32 %v1285, %v1313
    %v1351 = vmul.f32 %v1286, %v1313
    %v1352 = vmul.f32 %v1287, %v1313
    %v1353 = vmul.f32 %v1288, %v1313
    %v1354 = vmul.f32 %v1289, %v1313
    %v1355 = vmul.f32 %v1290, %v1313
    %v1356 = vmul.f32 %v1291, %v1313
    %v1357 = vmul.f32 %v1292, %v1313
    %v1358 = vmul.f32 %v1293, %v1313
    %v1359 = vmul.f32 %v1294, %v1313
    %v1360 = vmul.f32 %v1295, %v1313
    %v1361 = vmul.f32 %v1296, %v1313
    %v1362 = vmul.f32 %v1297, %v1313
    %v1363 = vmul.f32 %v1298, %v1313
    %v1364 = vmul.f32 %v1299, %v1313
    %v1365 = vmul.f32 %v1300, %v1313
    %v1366 = vmul.f32 %v1301, %v1313
    %v1367 = vmul.f32 %v1302, %v1313
    %v1368 = vmul.f32 %v1303, %v1313
    %v1369 = vmul.f32 %v1304, %v1313
    %v1370 = vmul.f32 %v1305, %v1313
    %v1371 = vmul.f32 %v1306, %v1313
    %v1372 = vmul.f32 %v1307, %v1313
    %v1373 = vmul.f32 %v1308, %v1313
    %v1374 = vmul.f32 %v1309, %v1313
    %v1375 = vmul.f32 %v1310, %v1313
    %v1376 = vmul.f32 %v1311, %v1313
    %v1377 = vmul.f32 %v1312, %v1313
    %v1378 = vfloor.f32 %v1314
    %v1379 = vfloor.f32 %v1315
    %v1380 = vfloor.f32 %v1316
    %v1381 = vfloor.f32 %v1317
    %v1382 = vfloor.f32 %v1318
    %v1383 = vfloor.f32 %v1319
    %v1384 = vfloor.f32 %v1320
    %v1385 = vfloor.f32 %v1321
    %v1386 = vfloor.f32 %v1322
    %v1387 = vfloor.f32 %v1323
    %v1388 = vfloor.f32 %v1324
    %v1389 = vfloor.f32 %v1325
    %v1390 = vfloor.f32 %v1326
    %v1391 = vfloor.f32 %v1327
    %v1392 = vfloor.f32 %v1328
    %v1393 = vfloor.f32 %v1329
    %v1394 = vfloor.f32 %v1330
    %v1395 = vfloor.f32 %v1331
    %v1396 = vfloor.f32 %v1332
    %v1397 = vfloor.f32 %v1333
    %v1398 = vfloor.f32 %v1334
    %v1399 = vfloor.f32 %v1335
    %v1400 = vfloor.f32 %v1336
    %v1401 = vfloor.f32 %v1337
    %v1402 = vfloor.f32 %v1338
    %v1403 = vfloor.f32 %v1339
    %v1404 = vfloor.f32 %v1340
    %v1405 = vfloor.f32 %v1341
    %v1406 = vfloor.f32 %v1342
    %v1407 = vfloor.f32 %v1343
    %v1408 = vfloor.f32 %v1344
    %v1409 = vfloor.f32 %v1345
    %v1410 = vfloor.f32 %v1346
    %v1411 = vfloor.f32 %v1347
    %v1412 = vfloor.f32 %v1348
    %v1413 = vfloor.f32 %v1349
    %v1414 = vfloor.f32 %v1350
    %v1415 = vfloor.f32 %v1351
    %v1416 = vfloor.f32 %v1352
    %v1417 = vfloor.f32 %v1353
    %v1418 = vfloor.f32 %v1354
    %v1419 = vfloor.f32 %v1355
    %v1420 = vfloor.f32 %v1356
    %v1421 = vfloor.f32 %v1357
    %v1422 = vfloor.f32 %v1358
    %v1423 = vfloor.f32 %v1359
    %v1424 = vfloor.f32 %v1360
    %v1425 = vfloor.f32 %v1361
    %v1426 = vfloor.f32 %v1362
    %v1427 = vfloor.f32 %v1363
    %v1428 = vfloor.f32 %v1364
    %v1429 = vfloor.f32 %v1365
    %v1430 = vfloor.f32 %v1366
    %v1431 = vfloor.f32 %v1367
    %v1432 = vfloor.f32 %v1368
    %v1433 = vfloor.f32 %v1369
    %v1434 = vfloor.f32 %v1370
    %v1435 = vfloor.f32 %v1371
    %v1436 = vfloor.f32 %v1372
    %v1437 = vfloor.f32 %v1373
    %v1438 = vfloor.f32 %v1374
    %v1439 = vfloor.f32 %v1375
    %v1440 = vfloor.f32 %v1376
    %v1441 = vfloor.f32 %v1377
    %v1442 = vmul.f32 %v1378, 16.0
    %v1443 = vmul.f32 %v1379, 16.0
    %v1444 = vmul.f32 %v1380, 16.0
    %v1445 = vmul.f32 %v1381, 16.0
    %v1446 = vmul.f32 %v1382, 16.0
    %v1447 = vmul.f32 %v1383, 16.0
    %v1448 = vmul.f32 %v1384, 16.0
    %v1449 = vmul.f32 %v1385, 16.0
    %v1450 = vmul.f32 %v1386, 16.0
    %v1451 = vmul.f32 %v1387, 16.0
    %v1452 = vmul.f32 %v1388, 16.0
    %v1453 = vmul.f32 %v1389, 16.0
    %v1454 = vmul.f32 %v1390, 16.0
    %v1455 = vmul.f32 %v1391, 16.0
    %v1456 = vmul.f32 %v1392, 16.0
    %v1457 = vmul.f32 %v1393, 16.0
    %v1458 = vmul.f32 %v1394, 16.0
    %v1459 = vmul.f32 %v1395, 16.0
    %v1460 = vmul.f32 %v1396, 16.0
    %v1461 = vmul.f32 %v1397, 16.0
    %v1462 = vmul.f32 %v1398, 16.0
    %v1463 = vmul.f32 %v1399, 16.0
    %v1464 = vmul.f32 %v1400, 16.0
    %v1465 = vmul.f32 %v1401, 16.0
    %v1466 = vmul.f32 %v1402, 16.0
    %v1467 = vmul.f32 %v1403, 16.0
    %v1468 = vmul.f32 %v1404, 16.0
    %v1469 = vmul.f32 %v1405, 16.0
    %v1470 = vmul.f32 %v1406, 16.0
    %v1471 = vmul.f32 %v1407, 16.0
    %v1472 = vmul.f32 %v1408, 16.0
    %v1473 = vmul.f32 %v1409, 16.0
    %v1474 = vmul.f32 %v1410, 16.0
    %v1475 = vmul.f32 %v1411, 16.0
    %v1476 = vmul.f32 %v1412, 16.0
    %v1477 = vmul.f32 %v1413, 16.0
    %v1478 = vmul.f32 %v1414, 16.0
    %v1479 = vmul.f32 %v1415, 16.0
    %v1480 = vmul.f32 %v1416, 16.0
    %v1481 = vmul.f32 %v1417, 16.0
    %v1482 = vmul.f32 %v1418, 16.0
    %v1483 = vmul.f32 %v1419, 16.0
    %v1484 = vmul.f32 %v1420, 16.0
    %v1485 = vmul.f32 %v1421, 16.0
    %v1486 = vmul.f32 %v1422, 16.0
    %v1487 = vmul.f32 %v1423, 16.0
    %v1488 = vmul.f32 %v1424, 16.0
    %v1489 = vmul.f32 %v1425, 16.0
    %v1490 = vmul.f32 %v1426, 16.0
    %v1491 = vmul.f32 %v1427, 16.0
    %v1492 = vmul.f32 %v1428, 16.0
    %v1493 = vmul.f32 %v1429, 16.0
    %v1494 = vmul.f32 %v1430, 16.0
    %v1495 = vmul.f32 %v1431, 16.0
    %v1496 = vmul.f32 %v1432, 16.0
    %v1497 = vmul.f32 %v1433, 16.0
    %v1498 = vmul.f32 %v1434, 16.0
    %v1499 = vmul.f32 %v1435, 16.0
    %v1500 = vmul.f32 %v1436, 16.0
    %v1501 = vmul.f32 %v1437, 16.0
    %v1502 = vmul.f32 %v1438, 16.0
    %v1503 = vmul.f32 %v1439, 16.0
    %v1504 = vmul.f32 %v1440, 16.0
    %v1505 = vmul.f32 %v1441, 16.0
    %v1506 = vsub.f32 %v1249, %v1442
    %v1507 = vsub.f32 %v1250, %v1443
    %v1508 = vsub.f32 %v1251, %v1444
    %v1509 = vsub.f32 %v1252, %v1445
    %v1510 = vsub.f32 %v1253, %v1446
    %v1511 = vsub.f32 %v1254, %v1447
    %v1512 = vsub.f32 %v1255, %v1448
    %v1513 = vsub.f32 %v1256, %v1449
    %v1514 = vsub.f32 %v1257, %v1450
    %v1515 = vsub.f32 %v1258, %v1451
    %v1516 = vsub.f32 %v1259, %v1452
    %v1517 = vsub.f32 %v1260, %v1453
    %v1518 = vsub.f32 %v1261, %v1454
    %v1519 = vsub.f32 %v1262, %v1455
    %v1520 = vsub.f32 %v1263, %v1456
    %v1521 = vsub.f32 %v1264, %v1457
    %v1522 = vsub.f32 %v1265, %v1458
    %v1523 = vsub.f32 %v1266, %v1459
    %v1524 = vsub.f32 %v1267, %v1460
    %v1525 = vsub.f32 %v1268, %v1461
    %v1526 = vsub.f32 %v1269, %v1462
    %v1527 = vsub.f32 %v1270, %v1463
    %v1528 = vsub.f32 %v1271, %v1464
    %v1529 = vsub.f32 %v1272, %v1465
    %v1530 = vsub.f32 %v1273, %v1466
    %v1531 = vsub.f32 %v1274, %v1467
    %v1532 = vsub.f32 %v1275, %v1468
    %v1533 = vsub.f32 %v1276, %v1469
    %v1534 = vsub.f32 %v1277, %v1470
    %v1535 = vsub.f32 %v1278, %v1471
    %v1536 = vsub.f32 %v1279, %v1472
    %v1537 = vsub.f32 %v1280, %v1473
    %v1538 = vsub.f32 %v1281, %v1474
    %v1539 = vsub.f32 %v1282, %v1475
    %v1540 = vsub.f32 %v1283, %v1476
    %v1541 = vsub.f32 %v1284, %v1477
    %v1542 = vsub.f32 %v1285, %v1478
    %v1543 = vsub.f32 %v1286, %v1479
    %v1544 = vsub.f32 %v1287, %v1480
    %v1545 = vsub.f32 %v1288, %v1481
    %v1546 = vsub.f32 %v1289, %v1482
    %v1547 = vsub.f32 %v1290, %v1483
    %v1548 = vsub.f32 %v1291, %v1484
    %v1549 = vsub.f32 %v1292, %v1485
    %v1550 = vsub.f32 %v1293, %v1486
    %v1551 = vsub.f32 %v1294, %v1487
    %v1552 = vsub.f32 %v1295, %v1488
    %v1553 = vsub.f32 %v1296, %v1489
    %v1554 = vsub.f32 %v1297, %v1490
    %v1555 = vsub.f32 %v1298, %v1491
    %v1556 = vsub.f32 %v1299, %v1492
    %v1557 = vsub.f32 %v1300, %v1493
    %v1558 = vsub.f32 %v1301, %v1494
    %v1559 = vsub.f32 %v1302, %v1495
    %v1560 = vsub.f32 %v1303, %v1496
    %v1561 = vsub.f32 %v1304, %v1497
    %v1562 = vsub.f32 %v1305, %v1498
    %v1563 = vsub.f32 %v1306, %v1499
    %v1564 = vsub.f32 %v1307, %v1500
    %v1565 = vsub.f32 %v1308, %v1501
    %v1566 = vsub.f32 %v1309, %v1502
    %v1567 = vsub.f32 %v1310, %v1503
    %v1568 = vsub.f32 %v1311, %v1504
    %v1569 = vsub.f32 %v1312, %v1505
    %v1570 = vmul.f32 %v1378, %v1313
    %v1571 = vmul.f32 %v1379, %v1313
    %v1572 = vmul.f32 %v1380, %v1313
    %v1573 = vmul.f32 %v1381, %v1313
    %v1574 = vmul.f32 %v1382, %v1313
    %v1575 = vmul.f32 %v1383, %v1313
    %v1576 = vmul.f32 %v1384, %v1313
    %v1577 = vmul.f32 %v1385, %v1313
    %v1578 = vmul.f32 %v1386, %v1313
    %v1579 = vmul.f32 %v1387, %v1313
    %v1580 = vmul.f32 %v1388, %v1313
    %v1581 = vmul.f32 %v1389, %v1313
    %v1582 = vmul.f32 %v1390, %v1313
    %v1583 = vmul.f32 %v1391, %v1313
    %v1584 = vmul.f32 %v1392, %v1313
    %v1585 = vmul.f32 %v1393, %v1313
    %v1586 = vmul.f32 %v1394, %v1313
    %v1587 = vmul.f32 %v1395, %v1313
    %v1588 = vmul.f32 %v1396, %v1313
    %v1589 = vmul.f32 %v1397, %v1313
    %v1590 = vmul.f32 %v1398, %v1313
    %v1591 = vmul.f32 %v1399, %v1313
    %v1592 = vmul.f32 %v1400, %v1313
    %v1593 = vmul.f32 %v1401, %v1313
    %v1594 = vmul.f32 %v1402, %v1313
    %v1595 = vmul.f32 %v1403, %v1313
    %v1596 = vmul.f32 %v1404, %v1313
    %v1597 = vmul.f32 %v1405, %v1313
    %v1598 = vmul.f32 %v1406, %v1313
    %v1599 = vmul.f32 %v1407, %v1313
    %v1600 = vmul.f32 %v1408, %v1313
    %v1601 = vmul.f32 %v1409, %v1313
    %v1602 = vmul.f32 %v1410, %v1313
    %v1603 = vmul.f32 %v1411, %v1313
    %v1604 = vmul.f32 %v1412, %v1313
    %v1605 = vmul.f32 %v1413, %v1313
    %v1606 = vmul.f32 %v1414, %v1313
    %v1607 = vmul.f32 %v1415, %v1313
    %v1608 = vmul.f32 %v1416, %v1313
    %v1609 = vmul.f32 %v1417, %v1313
    %v1610 = vmul.f32 %v1418, %v1313
    %v1611 = vmul.f32 %v1419, %v1313
    %v1612 = vmul.f32 %v1420, %v1313
    %v1613 = vmul.f32 %v1421, %v1313
    %v1614 = vmul.f32 %v1422, %v1313
    %v1615 = vmul.f32 %v1423, %v1313
    %v1616 = vmul.f32 %v1424, %v1313
    %v1617 = vmul.f32 %v1425, %v1313
    %v1618 = vmul.f32 %v1426, %v1313
    %v1619 = vmul.f32 %v1427, %v1313
    %v1620 = vmul.f32 %v1428, %v1313
    %v1621 = vmul.f32 %v1429, %v1313
    %v1622 = vmul.f32 %v1430, %v1313
    %v1623 = vmul.f32 %v1431, %v1313
    %v1624 = vmul.f32 %v1432, %v1313
    %v1625 = vmul.f32 %v1433, %v1313
    %v1626 = vmul.f32 %v1434, %v1313
    %v1627 = vmul.f32 %v1435, %v1313
    %v1628 = vmul.f32 %v1436, %v1313
    %v1629 = vmul.f32 %v1437, %v1313
    %v1630 = vmul.f32 %v1438, %v1313
    %v1631 = vmul.f32 %v1439, %v1313
    %v1632 = vmul.f32 %v1440, %v1313
    %v1633 = vmul.f32 %v1441, %v1313
    %v1634 = vfloor.f32 %v1570
    %v1635 = vfloor.f32 %v1571
    %v1636 = vfloor.f32 %v1572
    %v1637 = vfloor.f32 %v1573
    %v1638 = vfloor.f32 %v1574
    %v1639 = vfloor.f32 %v1575
    %v1640 = vfloor.f32 %v1576
    %v1641 = vfloor.f32 %v1577
    %v1642 = vfloor.f32 %v1578
    %v1643 = vfloor.f32 %v1579
    %v1644 = vfloor.f32 %v1580
    %v1645 = vfloor.f32 %v1581
    %v1646 = vfloor.f32 %v1582
    %v1647 = vfloor.f32 %v1583
    %v1648 = vfloor.f32 %v1584
    %v1649 = vfloor.f32 %v1585
    %v1650 = vfloor.f32 %v1586
    %v1651 = vfloor.f32 %v1587
    %v1652 = vfloor.f32 %v1588
    %v1653 = vfloor.f32 %v1589
    %v1654 = vfloor.f32 %v1590
    %v1655 = vfloor.f32 %v1591
    %v1656 = vfloor.f32 %v1592
    %v1657 = vfloor.f32 %v1593
    %v1658 = vfloor.f32 %v1594
    %v1659 = vfloor.f32 %v1595
    %v1660 = vfloor.f32 %v1596
    %v1661 = vfloor.f32 %v1597
    %v1662 = vfloor.f32 %v1598
    %v1663 = vfloor.f32 %v1599
    %v1664 = vfloor.f32 %v1600
    %v1665 = vfloor.f32 %v1601
    %v1666 = vfloor.f32 %v1602
    %v1667 = vfloor.f32 %v1603
    %v1668 = vfloor.f32 %v1604
    %v1669 = vfloor.f32 %v1605
    %v1670 = vfloor.f32 %v1606
    %v1671 = vfloor.f32 %v1607
    %v1672 = vfloor.f32 %v1608
    %v1673 = vfloor.f32 %v1609
    %v1674 = vfloor.f32 %v1610
    %v1675 = vfloor.f32 %v1611
    %v1676 = vfloor.f32 %v1612
    %v1677 = vfloor.f32 %v1613
    %v1678 = vfloor.f32 %v1614
    %v1679 = vfloor.f32 %v1615
    %v1680 = vfloor.f32 %v1616
    %v1681 = vfloor.f32 %v1617
    %v1682 = vfloor.f32 %v1618
    %v1683 = vfloor.f32 %v1619
    %v1684 = vfloor.f32 %v1620
    %v1685 = vfloor.f32 %v1621
    %v1686 = vfloor.f32 %v1622
    %v1687 = vfloor.f32 %v1623
    %v1688 = vfloor.f32 %v1624
    %v1689 = vfloor.f32 %v1625
    %v1690 = vfloor.f32 %v1626
    %v1691 = vfloor.f32 %v1627
    %v1692 = vfloor.f32 %v1628
    %v1693 = vfloor.f32 %v1629
    %v1694 = vfloor.f32 %v1630
    %v1695 = vfloor.f32 %v1631
    %v1696 = vfloor.f32 %v1632
    %v1697 = vfloor.f32 %v1633
    %v1698 = vmul.f32 %v1634, 16.0
    %v1699 = vmul.f32 %v1635, 16.0
    %v1700 = vmul.f32 %v1636, 16.0
    %v1701 = vmul.f32 %v1637, 16.0
    %v1702 = vmul.f32 %v1638, 16.0
    %v1703 = vmul.f32 %v1639, 16.0
    %v1704 = vmul.f32 %v1640, 16.0
    %v1705 = vmul.f32 %v1641, 16.0
    %v1706 = vmul.f32 %v1642, 16.0
    %v1707 = vmul.f32 %v1643, 16.0
    %v1708 = vmul.f32 %v1644, 16.0
    %v1709 = vmul.f32 %v1645, 16.0
    %v1710 = vmul.f32 %v1646, 16.0
    %v1711 = vmul.f32 %v1647, 16.0
    %v1712 = vmul.f32 %v1648, 16.0
    %v1713 = vmul.f32 %v1649, 16.0
    %v1714 = vmul.f32 %v1650, 16.0
    %v1715 = vmul.f32 %v1651, 16.0
    %v1716 = vmul.f32 %v1652, 16.0
    %v1717 = vmul.f32 %v1653, 16.0
    %v1718 = vmul.f32 %v1654, 16.0
    %v1719 = vmul.f32 %v1655, 16.0
    %v1720 = vmul.f32 %v1656, 16.0
    %v1721 = vmul.f32 %v1657, 16.0
    %v1722 = vmul.f32 %v1658, 16.0
    %v1723 = vmul.f32 %v1659, 16.0
    %v1724 = vmul.f32 %v1660, 16.0
    %v1725 = vmul.f32 %v1661, 16.0
    %v1726 = vmul.f32 %v1662, 16.0
    %v1727 = vmul.f32 %v1663, 16.0
    %v1728 = vmul.f32 %v1664, 16.0
    %v1729 = vmul.f32 %v1665, 16.0
    %v1730 = vmul.f32 %v1666, 16.0
    %v1731 = vmul.f32 %v1667, 16.0
    %v1732 = vmul.f32 %v1668, 16.0
    %v1733 = vmul.f32 %v1669, 16.0
    %v1734 = vmul.f32 %v1670, 16.0
    %v1735 = vmul.f32 %v1671, 16.0
    %v1736 = vmul.f32 %v1672, 16.0
    %v1737 = vmul.f32 %v1673, 16.0
    %v1738 = vmul.f32 %v1674, 16.0
    %v1739 = vmul.f32 %v1675, 16.0
    %v1740 = vmul.f32 %v1676, 16.0
    %v1741 = vmul.f32 %v1677, 16.0
    %v1742 = vmul.f32 %v1678, 16.0
    %v1743 = vmul.f32 %v1679, 16.0
    %v1744 = vmul.f32 %v1680, 16.0
    %v1745 = vmul.f32 %v1681, 16.0
    %v1746 = vmul.f32 %v1682, 16.0
    %v1747 = vmul.f32 %v1683, 16.0
    %v1748 = vmul.f32 %v1684, 16.0
    %v1749 = vmul.f32 %v1685, 16.0
    %v1750 = vmul.f32 %v1686, 16.0
    %v1751 = vmul.f32 %v1687, 16.0
    %v1752 = vmul.f32 %v1688, 16.0
    %v1753 = vmul.f32 %v1689, 16.0
    %v1754 = vmul.f32 %v1690, 16.0
    %v1755 = vmul.f32 %v1691, 16.0
    %v1756 = vmul.f32 %v1692, 16.0
    %v1757 = vmul.f32 %v1693, 16.0
    %v1758 = vmul.f32 %v1694, 16.0
    %v1759 = vmul.f32 %v1695, 16.0
    %v1760 = vmul.f32 %v1696, 16.0
    %v1761 = vmul.f32 %v1697, 16.0
    %v1762 = vsub.f32 %v1378, %v1698
    %v1763 = vsub.f32 %v1379, %v1699
    %v1764 = vsub.f32 %v1380, %v1700
    %v1765 = vsub.f32 %v1381, %v1701
    %v1766 = vsub.f32 %v1382, %v1702
    %v1767 = vsub.f32 %v1383, %v1703
    %v1768 = vsub.f32 %v1384, %v1704
    %v1769 = vsub.f32 %v1385, %v1705
    %v1770 = vsub.f32 %v1386, %v1706
    %v1771 = vsub.f32 %v1387, %v1707
    %v1772 = vsub.f32 %v1388, %v1708
    %v1773 = vsub.f32 %v1389, %v1709
    %v1774 = vsub.f32 %v1390, %v1710
    %v1775 = vsub.f32 %v1391, %v1711
    %v1776 = vsub.f32 %v1392, %v1712
    %v1777 = vsub.f32 %v1393, %v1713
    %v1778 = vsub.f32 %v1394, %v1714
    %v1779 = vsub.f32 %v1395, %v1715
    %v1780 = vsub.f32 %v1396, %v1716
    %v1781 = vsub.f32 %v1397, %v1717
    %v1782 = vsub.f32 %v1398, %v1718
    %v1783 = vsub.f32 %v1399, %v1719
    %v1784 = vsub.f32 %v1400, %v1720
    %v1785 = vsub.f32 %v1401, %v1721
    %v1786 = vsub.f32 %v1402, %v1722
    %v1787 = vsub.f32 %v1403, %v1723
    %v1788 = vsub.f32 %v1404, %v1724
    %v1789 = vsub.f32 %v1405, %v1725
    %v1790 = vsub.f32 %v1406, %v1726
    %v1791 = vsub.f32 %v1407, %v1727
    %v1792 = vsub.f32 %v1408, %v1728
    %v1793 = vsub.f32 %v1409, %v1729
    %v1794 = vsub.f32 %v1410, %v1730
    %v1795 = vsub.f32 %v1411, %v1731
    %v1796 = vsub.f32 %v1412, %v1732
    %v1797 = vsub.f32 %v1413, %v1733
    %v1798 = vsub.f32 %v1414, %v1734
    %v1799 = vsub.f32 %v1415, %v1735
    %v1800 = vsub.f32 %v1416, %v1736
    %v1801 = vsub.f32 %v1417, %v1737
    %v1802 = vsub.f32 %v1418, %v1738
    %v1803 = vsub.f32 %v1419, %v1739
    %v1804 = vsub.f32 %v1420, %v1740
    %v1805 = vsub.f32 %v1421, %v1741
    %v1806 = vsub.f32 %v1422, %v1742
    %v1807 = vsub.f32 %v1423, %v1743
    %v1808 = vsub.f32 %v1424, %v1744
    %v1809 = vsub.f32 %v1425, %v1745
    %v1810 = vsub.f32 %v1426, %v1746
    %v1811 = vsub.f32 %v1427, %v1747
    %v1812 = vsub.f32 %v1428, %v1748
    %v1813 = vsub.f32 %v1429, %v1749
    %v1814 = vsub.f32 %v1430, %v1750
    %v1815 = vsub.f32 %v1431, %v1751
    %v1816 = vsub.f32 %v1432, %v1752
    %v1817 = vsub.f32 %v1433, %v1753
    %v1818 = vsub.f32 %v1434, %v1754
    %v1819 = vsub.f32 %v1435, %v1755
    %v1820 = vsub.f32 %v1436, %v1756
    %v1821 = vsub.f32 %v1437, %v1757
    %v1822 = vsub.f32 %v1438, %v1758
    %v1823 = vsub.f32 %v1439, %v1759
    %v1824 = vsub.f32 %v1440, %v1760
    %v1825 = vsub.f32 %v1441, %v1761
    %vm1826 = vcmp.eq.s32.totalorder %v1117, 0
    %v1827 = vsel %vm1826, 1, 0
    %v1828 = vlaneseq
    %v1829 = vshrl.u32 %v1828, 7
    %v1830 = vsub.s32 0, %v1829
    %v1831 = vrot.slane %v1827, %v1830
    %vm1832 = vcmp.eq.s32.totalorder %v1831, 1
    %v1833 = vsel %vm1832, %v1506, %v1762
    %v1834 = vsel %vm1832, %v1507, %v1763
    %v1835 = vsel %vm1832, %v1508, %v1764
    %v1836 = vsel %vm1832, %v1509, %v1765
    %v1837 = vsel %vm1832, %v1510, %v1766
    %v1838 = vsel %vm1832, %v1511, %v1767
    %v1839 = vsel %vm1832, %v1512, %v1768
    %v1840 = vsel %vm1832, %v1513, %v1769
    %v1841 = vsel %vm1832, %v1514, %v1770
    %v1842 = vsel %vm1832, %v1515, %v1771
    %v1843 = vsel %vm1832, %v1516, %v1772
    %v1844 = vsel %vm1832, %v1517, %v1773
    %v1845 = vsel %vm1832, %v1518, %v1774
    %v1846 = vsel %vm1832, %v1519, %v1775
    %v1847 = vsel %vm1832, %v1520, %v1776
    %v1848 = vsel %vm1832, %v1521, %v1777
    %v1849 = vsel %vm1832, %v1522, %v1778
    %v1850 = vsel %vm1832, %v1523, %v1779
    %v1851 = vsel %vm1832, %v1524, %v1780
    %v1852 = vsel %vm1832, %v1525, %v1781
    %v1853 = vsel %vm1832, %v1526, %v1782
    %v1854 = vsel %vm1832, %v1527, %v1783
    %v1855 = vsel %vm1832, %v1528, %v1784
    %v1856 = vsel %vm1832, %v1529, %v1785
    %v1857 = vsel %vm1832, %v1530, %v1786
    %v1858 = vsel %vm1832, %v1531, %v1787
    %v1859 = vsel %vm1832, %v1532, %v1788
    %v1860 = vsel %vm1832, %v1533, %v1789
    %v1861 = vsel %vm1832, %v1534, %v1790
    %v1862 = vsel %vm1832, %v1535, %v1791
    %v1863 = vsel %vm1832, %v1536, %v1792
    %v1864 = vsel %vm1832, %v1537, %v1793
    %v1865 = vsel %vm1832, %v1538, %v1794
    %v1866 = vsel %vm1832, %v1539, %v1795
    %v1867 = vsel %vm1832, %v1540, %v1796
    %v1868 = vsel %vm1832, %v1541, %v1797
    %v1869 = vsel %vm1832, %v1542, %v1798
    %v1870 = vsel %vm1832, %v1543, %v1799
    %v1871 = vsel %vm1832, %v1544, %v1800
    %v1872 = vsel %vm1832, %v1545, %v1801
    %v1873 = vsel %vm1832, %v1546, %v1802
    %v1874 = vsel %vm1832, %v1547, %v1803
    %v1875 = vsel %vm1832, %v1548, %v1804
    %v1876 = vsel %vm1832, %v1549, %v1805
    %v1877 = vsel %vm1832, %v1550, %v1806
    %v1878 = vsel %vm1832, %v1551, %v1807
    %v1879 = vsel %vm1832, %v1552, %v1808
    %v1880 = vsel %vm1832, %v1553, %v1809
    %v1881 = vsel %vm1832, %v1554, %v1810
    %v1882 = vsel %vm1832, %v1555, %v1811
    %v1883 = vsel %vm1832, %v1556, %v1812
    %v1884 = vsel %vm1832, %v1557, %v1813
    %v1885 = vsel %vm1832, %v1558, %v1814
    %v1886 = vsel %vm1832, %v1559, %v1815
    %v1887 = vsel %vm1832, %v1560, %v1816
    %v1888 = vsel %vm1832, %v1561, %v1817
    %v1889 = vsel %vm1832, %v1562, %v1818
    %v1890 = vsel %vm1832, %v1563, %v1819
    %v1891 = vsel %vm1832, %v1564, %v1820
    %v1892 = vsel %vm1832, %v1565, %v1821
    %v1893 = vsel %vm1832, %v1566, %v1822
    %v1894 = vsel %vm1832, %v1567, %v1823
    %v1895 = vsel %vm1832, %v1568, %v1824
    %v1896 = vsel %vm1832, %v1569, %v1825
    %v1897 = vmul.f32 %v990, 2.0
    %v1898 = vmul.f32 %v992, 2.0
    %v1899 = vmul.f32 %v994, 2.0
    %v1900 = vmul.f32 %v996, 2.0
    %v1901 = vmul.f32 %v998, 2.0
    %v1902 = vmul.f32 %v1000, 2.0
    %v1903 = vmul.f32 %v1002, 2.0
    %v1904 = vmul.f32 %v1004, 2.0
    %v1905 = vmul.f32 %v1006, 2.0
    %v1906 = vmul.f32 %v1008, 2.0
    %v1907 = vmul.f32 %v1010, 2.0
    %v1908 = vmul.f32 %v1012, 2.0
    %v1909 = vmul.f32 %v1014, 2.0
    %v1910 = vmul.f32 %v1016, 2.0
    %v1911 = vmul.f32 %v1018, 2.0
    %v1912 = vmul.f32 %v1020, 2.0
    %v1913 = vmul.f32 %v1022, 2.0
    %v1914 = vmul.f32 %v1024, 2.0
    %v1915 = vmul.f32 %v1026, 2.0
    %v1916 = vmul.f32 %v1028, 2.0
    %v1917 = vmul.f32 %v1030, 2.0
    %v1918 = vmul.f32 %v1032, 2.0
    %v1919 = vmul.f32 %v1034, 2.0
    %v1920 = vmul.f32 %v1036, 2.0
    %v1921 = vmul.f32 %v1038, 2.0
    %v1922 = vmul.f32 %v1040, 2.0
    %v1923 = vmul.f32 %v1042, 2.0
    %v1924 = vmul.f32 %v1044, 2.0
    %v1925 = vmul.f32 %v1046, 2.0
    %v1926 = vmul.f32 %v1048, 2.0
    %v1927 = vmul.f32 %v1050, 2.0
    %v1928 = vmul.f32 %v1052, 2.0
    %v1929 = vmul.f32 %v1054, 2.0
    %v1930 = vmul.f32 %v1056, 2.0
    %v1931 = vmul.f32 %v1058, 2.0
    %v1932 = vmul.f32 %v1060, 2.0
    %v1933 = vmul.f32 %v1062, 2.0
    %v1934 = vmul.f32 %v1064, 2.0
    %v1935 = vmul.f32 %v1066, 2.0
    %v1936 = vmul.f32 %v1068, 2.0
    %v1937 = vmul.f32 %v1070, 2.0
    %v1938 = vmul.f32 %v1072, 2.0
    %v1939 = vmul.f32 %v1074, 2.0
    %v1940 = vmul.f32 %v1076, 2.0
    %v1941 = vmul.f32 %v1078, 2.0
    %v1942 = vmul.f32 %v1080, 2.0
    %v1943 = vmul.f32 %v1082, 2.0
    %v1944 = vmul.f32 %v1084, 2.0
    %v1945 = vmul.f32 %v1086, 2.0
    %v1946 = vmul.f32 %v1088, 2.0
    %v1947 = vmul.f32 %v1090, 2.0
    %v1948 = vmul.f32 %v1092, 2.0
    %v1949 = vmul.f32 %v1094, 2.0
    %v1950 = vmul.f32 %v1096, 2.0
    %v1951 = vmul.f32 %v1098, 2.0
    %v1952 = vmul.f32 %v1100, 2.0
    %v1953 = vmul.f32 %v1102, 2.0
    %v1954 = vmul.f32 %v1104, 2.0
    %v1955 = vmul.f32 %v1106, 2.0
    %v1956 = vmul.f32 %v1108, 2.0
    %v1957 = vmul.f32 %v1110, 2.0
    %v1958 = vmul.f32 %v1112, 2.0
    %v1959 = vmul.f32 %v1114, 2.0
    %v1960 = vmul.f32 %v1116, 2.0
    %v1961 = vsub.f32 %v1897, 0.5
    %v1962 = vsub.f32 %v1898, 0.5
    %v1963 = vsub.f32 %v1899, 0.5
    %v1964 = vsub.f32 %v1900, 0.5
    %v1965 = vsub.f32 %v1901, 0.5
    %v1966 = vsub.f32 %v1902, 0.5
    %v1967 = vsub.f32 %v1903, 0.5
    %v1968 = vsub.f32 %v1904, 0.5
    %v1969 = vsub.f32 %v1905, 0.5
    %v1970 = vsub.f32 %v1906, 0.5
    %v1971 = vsub.f32 %v1907, 0.5
    %v1972 = vsub.f32 %v1908, 0.5
    %v1973 = vsub.f32 %v1909, 0.5
    %v1974 = vsub.f32 %v1910, 0.5
    %v1975 = vsub.f32 %v1911, 0.5
    %v1976 = vsub.f32 %v1912, 0.5
    %v1977 = vsub.f32 %v1913, 0.5
    %v1978 = vsub.f32 %v1914, 0.5
    %v1979 = vsub.f32 %v1915, 0.5
    %v1980 = vsub.f32 %v1916, 0.5
    %v1981 = vsub.f32 %v1917, 0.5
    %v1982 = vsub.f32 %v1918, 0.5
    %v1983 = vsub.f32 %v1919, 0.5
    %v1984 = vsub.f32 %v1920, 0.5
    %v1985 = vsub.f32 %v1921, 0.5
    %v1986 = vsub.f32 %v1922, 0.5
    %v1987 = vsub.f32 %v1923, 0.5
    %v1988 = vsub.f32 %v1924, 0.5
    %v1989 = vsub.f32 %v1925, 0.5
    %v1990 = vsub.f32 %v1926, 0.5
    %v1991 = vsub.f32 %v1927, 0.5
    %v1992 = vsub.f32 %v1928, 0.5
    %v1993 = vsub.f32 %v1929, 0.5
    %v1994 = vsub.f32 %v1930, 0.5
    %v1995 = vsub.f32 %v1931, 0.5
    %v1996 = vsub.f32 %v1932, 0.5
    %v1997 = vsub.f32 %v1933, 0.5
    %v1998 = vsub.f32 %v1934, 0.5
    %v1999 = vsub.f32 %v1935, 0.5
    %v2000 = vsub.f32 %v1936, 0.5
    %v2001 = vsub.f32 %v1937, 0.5
    %v2002 = vsub.f32 %v1938, 0.5
    %v2003 = vsub.f32 %v1939, 0.5
    %v2004 = vsub.f32 %v1940, 0.5
    %v2005 = vsub.f32 %v1941, 0.5
    %v2006 = vsub.f32 %v1942, 0.5
    %v2007 = vsub.f32 %v1943, 0.5
    %v2008 = vsub.f32 %v1944, 0.5
    %v2009 = vsub.f32 %v1945, 0.5
    %v2010 = vsub.f32 %v1946, 0.5
    %v2011 = vsub.f32 %v1947, 0.5
    %v2012 = vsub.f32 %v1948, 0.5
    %v2013 = vsub.f32 %v1949, 0.5
    %v2014 = vsub.f32 %v1950, 0.5
    %v2015 = vsub.f32 %v1951, 0.5
    %v2016 = vsub.f32 %v1952, 0.5
    %v2017 = vsub.f32 %v1953, 0.5
    %v2018 = vsub.f32 %v1954, 0.5
    %v2019 = vsub.f32 %v1955, 0.5
    %v2020 = vsub.f32 %v1956, 0.5
    %v2021 = vsub.f32 %v1957, 0.5
    %v2022 = vsub.f32 %v1958, 0.5
    %v2023 = vsub.f32 %v1959, 0.5
    %v2024 = vsub.f32 %v1960, 0.5
    %v2025 = vadd.f32 %v1961, %v1833
    %v2026 = vadd.f32 %v1962, %v1834
    %v2027 = vadd.f32 %v1963, %v1835
    %v2028 = vadd.f32 %v1964, %v1836
    %v2029 = vadd.f32 %v1965, %v1837
    %v2030 = vadd.f32 %v1966, %v1838
    %v2031 = vadd.f32 %v1967, %v1839
    %v2032 = vadd.f32 %v1968, %v1840
    %v2033 = vadd.f32 %v1969, %v1841
    %v2034 = vadd.f32 %v1970, %v1842
    %v2035 = vadd.f32 %v1971, %v1843
    %v2036 = vadd.f32 %v1972, %v1844
    %v2037 = vadd.f32 %v1973, %v1845
    %v2038 = vadd.f32 %v1974, %v1846
    %v2039 = vadd.f32 %v1975, %v1847
    %v2040 = vadd.f32 %v1976, %v1848
    %v2041 = vadd.f32 %v1977, %v1849
    %v2042 = vadd.f32 %v1978, %v1850
    %v2043 = vadd.f32 %v1979, %v1851
    %v2044 = vadd.f32 %v1980, %v1852
    %v2045 = vadd.f32 %v1981, %v1853
    %v2046 = vadd.f32 %v1982, %v1854
    %v2047 = vadd.f32 %v1983, %v1855
    %v2048 = vadd.f32 %v1984, %v1856
    %v2049 = vadd.f32 %v1985, %v1857
    %v2050 = vadd.f32 %v1986, %v1858
    %v2051 = vadd.f32 %v1987, %v1859
    %v2052 = vadd.f32 %v1988, %v1860
    %v2053 = vadd.f32 %v1989, %v1861
    %v2054 = vadd.f32 %v1990, %v1862
    %v2055 = vadd.f32 %v1991, %v1863
    %v2056 = vadd.f32 %v1992, %v1864
    %v2057 = vadd.f32 %v1993, %v1865
    %v2058 = vadd.f32 %v1994, %v1866
    %v2059 = vadd.f32 %v1995, %v1867
    %v2060 = vadd.f32 %v1996, %v1868
    %v2061 = vadd.f32 %v1997, %v1869
    %v2062 = vadd.f32 %v1998, %v1870
    %v2063 = vadd.f32 %v1999, %v1871
    %v2064 = vadd.f32 %v2000, %v1872
    %v2065 = vadd.f32 %v2001, %v1873
    %v2066 = vadd.f32 %v2002, %v1874
    %v2067 = vadd.f32 %v2003, %v1875
    %v2068 = vadd.f32 %v2004, %v1876
    %v2069 = vadd.f32 %v2005, %v1877
    %v2070 = vadd.f32 %v2006, %v1878
    %v2071 = vadd.f32 %v2007, %v1879
    %v2072 = vadd.f32 %v2008, %v1880
    %v2073 = vadd.f32 %v2009, %v1881
    %v2074 = vadd.f32 %v2010, %v1882
    %v2075 = vadd.f32 %v2011, %v1883
    %v2076 = vadd.f32 %v2012, %v1884
    %v2077 = vadd.f32 %v2013, %v1885
    %v2078 = vadd.f32 %v2014, %v1886
    %v2079 = vadd.f32 %v2015, %v1887
    %v2080 = vadd.f32 %v2016, %v1888
    %v2081 = vadd.f32 %v2017, %v1889
    %v2082 = vadd.f32 %v2018, %v1890
    %v2083 = vadd.f32 %v2019, %v1891
    %v2084 = vadd.f32 %v2020, %v1892
    %v2085 = vadd.f32 %v2021, %v1893
    %v2086 = vadd.f32 %v2022, %v1894
    %v2087 = vadd.f32 %v2023, %v1895
    %v2088 = vadd.f32 %v2024, %v1896
    %v2089 = vmul.f32 %v2025, 8.0
    %v2090 = vmul.f32 %v2026, 8.0
    %v2091 = vmul.f32 %v2027, 8.0
    %v2092 = vmul.f32 %v2028, 8.0
    %v2093 = vmul.f32 %v2029, 8.0
    %v2094 = vmul.f32 %v2030, 8.0
    %v2095 = vmul.f32 %v2031, 8.0
    %v2096 = vmul.f32 %v2032, 8.0
    %v2097 = vmul.f32 %v2033, 8.0
    %v2098 = vmul.f32 %v2034, 8.0
    %v2099 = vmul.f32 %v2035, 8.0
    %v2100 = vmul.f32 %v2036, 8.0
    %v2101 = vmul.f32 %v2037, 8.0
    %v2102 = vmul.f32 %v2038, 8.0
    %v2103 = vmul.f32 %v2039, 8.0
    %v2104 = vmul.f32 %v2040, 8.0
    %v2105 = vmul.f32 %v2041, 8.0
    %v2106 = vmul.f32 %v2042, 8.0
    %v2107 = vmul.f32 %v2043, 8.0
    %v2108 = vmul.f32 %v2044, 8.0
    %v2109 = vmul.f32 %v2045, 8.0
    %v2110 = vmul.f32 %v2046, 8.0
    %v2111 = vmul.f32 %v2047, 8.0
    %v2112 = vmul.f32 %v2048, 8.0
    %v2113 = vmul.f32 %v2049, 8.0
    %v2114 = vmul.f32 %v2050, 8.0
    %v2115 = vmul.f32 %v2051, 8.0
    %v2116 = vmul.f32 %v2052, 8.0
    %v2117 = vmul.f32 %v2053, 8.0
    %v2118 = vmul.f32 %v2054, 8.0
    %v2119 = vmul.f32 %v2055, 8.0
    %v2120 = vmul.f32 %v2056, 8.0
    %v2121 = vmul.f32 %v2057, 8.0
    %v2122 = vmul.f32 %v2058, 8.0
    %v2123 = vmul.f32 %v2059, 8.0
    %v2124 = vmul.f32 %v2060, 8.0
    %v2125 = vmul.f32 %v2061, 8.0
    %v2126 = vmul.f32 %v2062, 8.0
    %v2127 = vmul.f32 %v2063, 8.0
    %v2128 = vmul.f32 %v2064, 8.0
    %v2129 = vmul.f32 %v2065, 8.0
    %v2130 = vmul.f32 %v2066, 8.0
    %v2131 = vmul.f32 %v2067, 8.0
    %v2132 = vmul.f32 %v2068, 8.0
    %v2133 = vmul.f32 %v2069, 8.0
    %v2134 = vmul.f32 %v2070, 8.0
    %v2135 = vmul.f32 %v2071, 8.0
    %v2136 = vmul.f32 %v2072, 8.0
    %v2137 = vmul.f32 %v2073, 8.0
    %v2138 = vmul.f32 %v2074, 8.0
    %v2139 = vmul.f32 %v2075, 8.0
    %v2140 = vmul.f32 %v2076, 8.0
    %v2141 = vmul.f32 %v2077, 8.0
    %v2142 = vmul.f32 %v2078, 8.0
    %v2143 = vmul.f32 %v2079, 8.0
    %v2144 = vmul.f32 %v2080, 8.0
    %v2145 = vmul.f32 %v2081, 8.0
    %v2146 = vmul.f32 %v2082, 8.0
    %v2147 = vmul.f32 %v2083, 8.0
    %v2148 = vmul.f32 %v2084, 8.0
    %v2149 = vmul.f32 %v2085, 8.0
    %v2150 = vmul.f32 %v2086, 8.0
    %v2151 = vmul.f32 %v2087, 8.0
    %v2152 = vmul.f32 %v2088, 8.0
    %v2153 = vmul.f32 %v1897, %v1897
    %v2154 = vmul.f32 %v1898, %v1898
    %v2155 = vmul.f32 %v1899, %v1899
    %v2156 = vmul.f32 %v1900, %v1900
    %v2157 = vmul.f32 %v1901, %v1901
    %v2158 = vmul.f32 %v1902, %v1902
    %v2159 = vmul.f32 %v1903, %v1903
    %v2160 = vmul.f32 %v1904, %v1904
    %v2161 = vmul.f32 %v1905, %v1905
    %v2162 = vmul.f32 %v1906, %v1906
    %v2163 = vmul.f32 %v1907, %v1907
    %v2164 = vmul.f32 %v1908, %v1908
    %v2165 = vmul.f32 %v1909, %v1909
    %v2166 = vmul.f32 %v1910, %v1910
    %v2167 = vmul.f32 %v1911, %v1911
    %v2168 = vmul.f32 %v1912, %v1912
    %v2169 = vmul.f32 %v1913, %v1913
    %v2170 = vmul.f32 %v1914, %v1914
    %v2171 = vmul.f32 %v1915, %v1915
    %v2172 = vmul.f32 %v1916, %v1916
    %v2173 = vmul.f32 %v1917, %v1917
    %v2174 = vmul.f32 %v1918, %v1918
    %v2175 = vmul.f32 %v1919, %v1919
    %v2176 = vmul.f32 %v1920, %v1920
    %v2177 = vmul.f32 %v1921, %v1921
    %v2178 = vmul.f32 %v1922, %v1922
    %v2179 = vmul.f32 %v1923, %v1923
    %v2180 = vmul.f32 %v1924, %v1924
    %v2181 = vmul.f32 %v1925, %v1925
    %v2182 = vmul.f32 %v1926, %v1926
    %v2183 = vmul.f32 %v1927, %v1927
    %v2184 = vmul.f32 %v1928, %v1928
    %v2185 = vmul.f32 %v1929, %v1929
    %v2186 = vmul.f32 %v1930, %v1930
    %v2187 = vmul.f32 %v1931, %v1931
    %v2188 = vmul.f32 %v1932, %v1932
    %v2189 = vmul.f32 %v1933, %v1933
    %v2190 = vmul.f32 %v1934, %v1934
    %v2191 = vmul.f32 %v1935, %v1935
    %v2192 = vmul.f32 %v1936, %v1936
    %v2193 = vmul.f32 %v1937, %v1937
    %v2194 = vmul.f32 %v1938, %v1938
    %v2195 = vmul.f32 %v1939, %v1939
    %v2196 = vmul.f32 %v1940, %v1940
    %v2197 = vmul.f32 %v1941, %v1941
    %v2198 = vmul.f32 %v1942, %v1942
    %v2199 = vmul.f32 %v1943, %v1943
    %v2200 = vmul.f32 %v1944, %v1944
    %v2201 = vmul.f32 %v1945, %v1945
    %v2202 = vmul.f32 %v1946, %v1946
    %v2203 = vmul.f32 %v1947, %v1947
    %v2204 = vmul.f32 %v1948, %v1948
    %v2205 = vmul.f32 %v1949, %v1949
    %v2206 = vmul.f32 %v1950, %v1950
    %v2207 = vmul.f32 %v1951, %v1951
    %v2208 = vmul.f32 %v1952, %v1952
    %v2209 = vmul.f32 %v1953, %v1953
    %v2210 = vmul.f32 %v1954, %v1954
    %v2211 = vmul.f32 %v1955, %v1955
    %v2212 = vmul.f32 %v1956, %v1956
    %v2213 = vmul.f32 %v1957, %v1957
    %v2214 = vmul.f32 %v1958, %v1958
    %v2215 = vmul.f32 %v1959, %v1959
    %v2216 = vmul.f32 %v1960, %v1960
    %v2217 = vld [vmem:[%s4] sm:$0x1]
    %v2219 = vlaneseq
    %v2220 = vshrl.u32 %v2219, 7
    %v2221 = vsub.s32 0, %v2220
    %v2222 = vrot.slane %v2217, %v2221
    %v2224 = vmul.f32 %v2153, %v2222
    %v2225 = vmul.f32 %v2154, %v2222
    %v2226 = vmul.f32 %v2155, %v2222
    %v2227 = vmul.f32 %v2156, %v2222
    %v2228 = vmul.f32 %v2157, %v2222
    %v2229 = vmul.f32 %v2158, %v2222
    %v2230 = vmul.f32 %v2159, %v2222
    %v2231 = vmul.f32 %v2160, %v2222
    %v2232 = vmul.f32 %v2161, %v2222
    %v2233 = vmul.f32 %v2162, %v2222
    %v2234 = vmul.f32 %v2163, %v2222
    %v2235 = vmul.f32 %v2164, %v2222
    %v2236 = vmul.f32 %v2165, %v2222
    %v2237 = vmul.f32 %v2166, %v2222
    %v2238 = vmul.f32 %v2167, %v2222
    %v2239 = vmul.f32 %v2168, %v2222
    %v2240 = vmul.f32 %v2169, %v2222
    %v2241 = vmul.f32 %v2170, %v2222
    %v2242 = vmul.f32 %v2171, %v2222
    %v2243 = vmul.f32 %v2172, %v2222
    %v2244 = vmul.f32 %v2173, %v2222
    %v2245 = vmul.f32 %v2174, %v2222
    %v2246 = vmul.f32 %v2175, %v2222
    %v2247 = vmul.f32 %v2176, %v2222
    %v2248 = vmul.f32 %v2177, %v2222
    %v2249 = vmul.f32 %v2178, %v2222
    %v2250 = vmul.f32 %v2179, %v2222
    %v2251 = vmul.f32 %v2180, %v2222
    %v2252 = vmul.f32 %v2181, %v2222
    %v2253 = vmul.f32 %v2182, %v2222
    %v2254 = vmul.f32 %v2183, %v2222
    %v2255 = vmul.f32 %v2184, %v2222
    %v2256 = vmul.f32 %v2185, %v2222
    %v2257 = vmul.f32 %v2186, %v2222
    %v2258 = vmul.f32 %v2187, %v2222
    %v2259 = vmul.f32 %v2188, %v2222
    %v2260 = vmul.f32 %v2189, %v2222
    %v2261 = vmul.f32 %v2190, %v2222
    %v2262 = vmul.f32 %v2191, %v2222
    %v2263 = vmul.f32 %v2192, %v2222
    %v2264 = vmul.f32 %v2193, %v2222
    %v2265 = vmul.f32 %v2194, %v2222
    %v2266 = vmul.f32 %v2195, %v2222
    %v2267 = vmul.f32 %v2196, %v2222
    %v2268 = vmul.f32 %v2197, %v2222
    %v2269 = vmul.f32 %v2198, %v2222
    %v2270 = vmul.f32 %v2199, %v2222
    %v2271 = vmul.f32 %v2200, %v2222
    %v2272 = vmul.f32 %v2201, %v2222
    %v2273 = vmul.f32 %v2202, %v2222
    %v2274 = vmul.f32 %v2203, %v2222
    %v2275 = vmul.f32 %v2204, %v2222
    %v2276 = vmul.f32 %v2205, %v2222
    %v2277 = vmul.f32 %v2206, %v2222
    %v2278 = vmul.f32 %v2207, %v2222
    %v2279 = vmul.f32 %v2208, %v2222
    %v2280 = vmul.f32 %v2209, %v2222
    %v2281 = vmul.f32 %v2210, %v2222
    %v2282 = vmul.f32 %v2211, %v2222
    %v2283 = vmul.f32 %v2212, %v2222
    %v2284 = vmul.f32 %v2213, %v2222
    %v2285 = vmul.f32 %v2214, %v2222
    %v2286 = vmul.f32 %v2215, %v2222
    %v2287 = vmul.f32 %v2216, %v2222
    %vm2288 = vcmp.lt.s32.totalorder %v1117, 2
    %vm2289 = vcmp.eq.s32.totalorder %v1117, 2
    %v2290 = vsel %vm2289, 1, 0
    %v2291 = vlaneseq
    %v2292 = vshrl.u32 %v2291, 7
    %v2293 = vsub.s32 0, %v2292
    %v2294 = vrot.slane %v2290, %v2293
    %vm2295 = vcmp.eq.s32.totalorder %v2294, 1
    %v2296 = vsel %vm2295, %v2224, %v990
    %v2297 = vsel %vm2295, %v2225, %v992
    %v2298 = vsel %vm2295, %v2226, %v994
    %v2299 = vsel %vm2295, %v2227, %v996
    %v2300 = vsel %vm2295, %v2228, %v998
    %v2301 = vsel %vm2295, %v2229, %v1000
    %v2302 = vsel %vm2295, %v2230, %v1002
    %v2303 = vsel %vm2295, %v2231, %v1004
    %v2304 = vsel %vm2295, %v2232, %v1006
    %v2305 = vsel %vm2295, %v2233, %v1008
    %v2306 = vsel %vm2295, %v2234, %v1010
    %v2307 = vsel %vm2295, %v2235, %v1012
    %v2308 = vsel %vm2295, %v2236, %v1014
    %v2309 = vsel %vm2295, %v2237, %v1016
    %v2310 = vsel %vm2295, %v2238, %v1018
    %v2311 = vsel %vm2295, %v2239, %v1020
    %v2312 = vsel %vm2295, %v2240, %v1022
    %v2313 = vsel %vm2295, %v2241, %v1024
    %v2314 = vsel %vm2295, %v2242, %v1026
    %v2315 = vsel %vm2295, %v2243, %v1028
    %v2316 = vsel %vm2295, %v2244, %v1030
    %v2317 = vsel %vm2295, %v2245, %v1032
    %v2318 = vsel %vm2295, %v2246, %v1034
    %v2319 = vsel %vm2295, %v2247, %v1036
    %v2320 = vsel %vm2295, %v2248, %v1038
    %v2321 = vsel %vm2295, %v2249, %v1040
    %v2322 = vsel %vm2295, %v2250, %v1042
    %v2323 = vsel %vm2295, %v2251, %v1044
    %v2324 = vsel %vm2295, %v2252, %v1046
    %v2325 = vsel %vm2295, %v2253, %v1048
    %v2326 = vsel %vm2295, %v2254, %v1050
    %v2327 = vsel %vm2295, %v2255, %v1052
    %v2328 = vsel %vm2295, %v2256, %v1054
    %v2329 = vsel %vm2295, %v2257, %v1056
    %v2330 = vsel %vm2295, %v2258, %v1058
    %v2331 = vsel %vm2295, %v2259, %v1060
    %v2332 = vsel %vm2295, %v2260, %v1062
    %v2333 = vsel %vm2295, %v2261, %v1064
    %v2334 = vsel %vm2295, %v2262, %v1066
    %v2335 = vsel %vm2295, %v2263, %v1068
    %v2336 = vsel %vm2295, %v2264, %v1070
    %v2337 = vsel %vm2295, %v2265, %v1072
    %v2338 = vsel %vm2295, %v2266, %v1074
    %v2339 = vsel %vm2295, %v2267, %v1076
    %v2340 = vsel %vm2295, %v2268, %v1078
    %v2341 = vsel %vm2295, %v2269, %v1080
    %v2342 = vsel %vm2295, %v2270, %v1082
    %v2343 = vsel %vm2295, %v2271, %v1084
    %v2344 = vsel %vm2295, %v2272, %v1086
    %v2345 = vsel %vm2295, %v2273, %v1088
    %v2346 = vsel %vm2295, %v2274, %v1090
    %v2347 = vsel %vm2295, %v2275, %v1092
    %v2348 = vsel %vm2295, %v2276, %v1094
    %v2349 = vsel %vm2295, %v2277, %v1096
    %v2350 = vsel %vm2295, %v2278, %v1098
    %v2351 = vsel %vm2295, %v2279, %v1100
    %v2352 = vsel %vm2295, %v2280, %v1102
    %v2353 = vsel %vm2295, %v2281, %v1104
    %v2354 = vsel %vm2295, %v2282, %v1106
    %v2355 = vsel %vm2295, %v2283, %v1108
    %v2356 = vsel %vm2295, %v2284, %v1110
    %v2357 = vsel %vm2295, %v2285, %v1112
    %v2358 = vsel %vm2295, %v2286, %v1114
    %v2359 = vsel %vm2295, %v2287, %v1116
    %v2360 = vsel %vm2288, 1, 0
    %v2361 = vlaneseq
    %v2362 = vshrl.u32 %v2361, 7
    %v2363 = vsub.s32 0, %v2362
    %v2364 = vrot.slane %v2360, %v2363
    %vm2365 = vcmp.eq.s32.totalorder %v2364, 1
    %v2366 = vsel %vm2365, %v2089, %v2296
    %v2367 = vsel %vm2365, %v2090, %v2297
    %v2368 = vsel %vm2365, %v2091, %v2298
    %v2369 = vsel %vm2365, %v2092, %v2299
    %v2370 = vsel %vm2365, %v2093, %v2300
    %v2371 = vsel %vm2365, %v2094, %v2301
    %v2372 = vsel %vm2365, %v2095, %v2302
    %v2373 = vsel %vm2365, %v2096, %v2303
    %v2374 = vsel %vm2365, %v2097, %v2304
    %v2375 = vsel %vm2365, %v2098, %v2305
    %v2376 = vsel %vm2365, %v2099, %v2306
    %v2377 = vsel %vm2365, %v2100, %v2307
    %v2378 = vsel %vm2365, %v2101, %v2308
    %v2379 = vsel %vm2365, %v2102, %v2309
    %v2380 = vsel %vm2365, %v2103, %v2310
    %v2381 = vsel %vm2365, %v2104, %v2311
    %v2382 = vsel %vm2365, %v2105, %v2312
    %v2383 = vsel %vm2365, %v2106, %v2313
    %v2384 = vsel %vm2365, %v2107, %v2314
    %v2385 = vsel %vm2365, %v2108, %v2315
    %v2386 = vsel %vm2365, %v2109, %v2316
    %v2387 = vsel %vm2365, %v2110, %v2317
    %v2388 = vsel %vm2365, %v2111, %v2318
    %v2389 = vsel %vm2365, %v2112, %v2319
    %v2390 = vsel %vm2365, %v2113, %v2320
    %v2391 = vsel %vm2365, %v2114, %v2321
    %v2392 = vsel %vm2365, %v2115, %v2322
    %v2393 = vsel %vm2365, %v2116, %v2323
    %v2394 = vsel %vm2365, %v2117, %v2324
    %v2395 = vsel %vm2365, %v2118, %v2325
    %v2396 = vsel %vm2365, %v2119, %v2326
    %v2397 = vsel %vm2365, %v2120, %v2327
    %v2398 = vsel %vm2365, %v2121, %v2328
    %v2399 = vsel %vm2365, %v2122, %v2329
    %v2400 = vsel %vm2365, %v2123, %v2330
    %v2401 = vsel %vm2365, %v2124, %v2331
    %v2402 = vsel %vm2365, %v2125, %v2332
    %v2403 = vsel %vm2365, %v2126, %v2333
    %v2404 = vsel %vm2365, %v2127, %v2334
    %v2405 = vsel %vm2365, %v2128, %v2335
    %v2406 = vsel %vm2365, %v2129, %v2336
    %v2407 = vsel %vm2365, %v2130, %v2337
    %v2408 = vsel %vm2365, %v2131, %v2338
    %v2409 = vsel %vm2365, %v2132, %v2339
    %v2410 = vsel %vm2365, %v2133, %v2340
    %v2411 = vsel %vm2365, %v2134, %v2341
    %v2412 = vsel %vm2365, %v2135, %v2342
    %v2413 = vsel %vm2365, %v2136, %v2343
    %v2414 = vsel %vm2365, %v2137, %v2344
    %v2415 = vsel %vm2365, %v2138, %v2345
    %v2416 = vsel %vm2365, %v2139, %v2346
    %v2417 = vsel %vm2365, %v2140, %v2347
    %v2418 = vsel %vm2365, %v2141, %v2348
    %v2419 = vsel %vm2365, %v2142, %v2349
    %v2420 = vsel %vm2365, %v2143, %v2350
    %v2421 = vsel %vm2365, %v2144, %v2351
    %v2422 = vsel %vm2365, %v2145, %v2352
    %v2423 = vsel %vm2365, %v2146, %v2353
    %v2424 = vsel %vm2365, %v2147, %v2354
    %v2425 = vsel %vm2365, %v2148, %v2355
    %v2426 = vsel %vm2365, %v2149, %v2356
    %v2427 = vsel %vm2365, %v2150, %v2357
    %v2428 = vsel %vm2365, %v2151, %v2358
    %v2429 = vsel %vm2365, %v2152, %v2359
    %2430 = vst [vmem:[#allocation8] sm:$0xff] %v2366
    %2431 = vst [vmem:[#allocation8 + $0x8] sm:$0xff] %v2367
    %2432 = vst [vmem:[#allocation8 + $0x10] sm:$0xff] %v2368
    %2433 = vst [vmem:[#allocation8 + $0x18] sm:$0xff] %v2369
    %2434 = vst [vmem:[#allocation8 + $0x20] sm:$0xff] %v2370
    %2435 = vst [vmem:[#allocation8 + $0x28] sm:$0xff] %v2371
    %2436 = vst [vmem:[#allocation8 + $0x30] sm:$0xff] %v2372
    %2437 = vst [vmem:[#allocation8 + $0x38] sm:$0xff] %v2373
    %2438 = vst [vmem:[#allocation8 + $0x40] sm:$0xff] %v2374
    %2439 = vst [vmem:[#allocation8 + $0x48] sm:$0xff] %v2375
    %2440 = vst [vmem:[#allocation8 + $0x50] sm:$0xff] %v2376
    %2441 = vst [vmem:[#allocation8 + $0x58] sm:$0xff] %v2377
    %2442 = vst [vmem:[#allocation8 + $0x60] sm:$0xff] %v2378
    %2443 = vst [vmem:[#allocation8 + $0x68] sm:$0xff] %v2379
    %2444 = vst [vmem:[#allocation8 + $0x70] sm:$0xff] %v2380
    %2445 = vst [vmem:[#allocation8 + $0x78] sm:$0xff] %v2381
    %2446 = vst [vmem:[#allocation8 + $0x80] sm:$0xff] %v2382
    %2447 = vst [vmem:[#allocation8 + $0x88] sm:$0xff] %v2383
    %2448 = vst [vmem:[#allocation8 + $0x90] sm:$0xff] %v2384
    %2449 = vst [vmem:[#allocation8 + $0x98] sm:$0xff] %v2385
    %2450 = vst [vmem:[#allocation8 + $0xa0] sm:$0xff] %v2386
    %2451 = vst [vmem:[#allocation8 + $0xa8] sm:$0xff] %v2387
    %2452 = vst [vmem:[#allocation8 + $0xb0] sm:$0xff] %v2388
    %2453 = vst [vmem:[#allocation8 + $0xb8] sm:$0xff] %v2389
    %2454 = vst [vmem:[#allocation8 + $0xc0] sm:$0xff] %v2390
    %2455 = vst [vmem:[#allocation8 + $0xc8] sm:$0xff] %v2391
    %2456 = vst [vmem:[#allocation8 + $0xd0] sm:$0xff] %v2392
    %2457 = vst [vmem:[#allocation8 + $0xd8] sm:$0xff] %v2393
    %2458 = vst [vmem:[#allocation8 + $0xe0] sm:$0xff] %v2394
    %2459 = vst [vmem:[#allocation8 + $0xe8] sm:$0xff] %v2395
    %2460 = vst [vmem:[#allocation8 + $0xf0] sm:$0xff] %v2396
    %2461 = vst [vmem:[#allocation8 + $0xf8] sm:$0xff] %v2397
    %2462 = vst [vmem:[#allocation8 + $0x100] sm:$0xff] %v2398
    %2463 = vst [vmem:[#allocation8 + $0x108] sm:$0xff] %v2399
    %2464 = vst [vmem:[#allocation8 + $0x110] sm:$0xff] %v2400
    %2465 = vst [vmem:[#allocation8 + $0x118] sm:$0xff] %v2401
    %2466 = vst [vmem:[#allocation8 + $0x120] sm:$0xff] %v2402
    %2467 = vst [vmem:[#allocation8 + $0x128] sm:$0xff] %v2403
    %2468 = vst [vmem:[#allocation8 + $0x130] sm:$0xff] %v2404
    %2469 = vst [vmem:[#allocation8 + $0x138] sm:$0xff] %v2405
    %2470 = vst [vmem:[#allocation8 + $0x140] sm:$0xff] %v2406
    %2471 = vst [vmem:[#allocation8 + $0x148] sm:$0xff] %v2407
    %2472 = vst [vmem:[#allocation8 + $0x150] sm:$0xff] %v2408
    %2473 = vst [vmem:[#allocation8 + $0x158] sm:$0xff] %v2409
    %2474 = vst [vmem:[#allocation8 + $0x160] sm:$0xff] %v2410
    %2475 = vst [vmem:[#allocation8 + $0x168] sm:$0xff] %v2411
    %2476 = vst [vmem:[#allocation8 + $0x170] sm:$0xff] %v2412
    %2477 = vst [vmem:[#allocation8 + $0x178] sm:$0xff] %v2413
    %2478 = vst [vmem:[#allocation8 + $0x180] sm:$0xff] %v2414
    %2479 = vst [vmem:[#allocation8 + $0x188] sm:$0xff] %v2415
    %2480 = vst [vmem:[#allocation8 + $0x190] sm:$0xff] %v2416
    %2481 = vst [vmem:[#allocation8 + $0x198] sm:$0xff] %v2417
    %2482 = vst [vmem:[#allocation8 + $0x1a0] sm:$0xff] %v2418
    %2483 = vst [vmem:[#allocation8 + $0x1a8] sm:$0xff] %v2419
    %2484 = vst [vmem:[#allocation8 + $0x1b0] sm:$0xff] %v2420
    %2485 = vst [vmem:[#allocation8 + $0x1b8] sm:$0xff] %v2421
    %2486 = vst [vmem:[#allocation8 + $0x1c0] sm:$0xff] %v2422
    %2487 = vst [vmem:[#allocation8 + $0x1c8] sm:$0xff] %v2423
    %2488 = vst [vmem:[#allocation8 + $0x1d0] sm:$0xff] %v2424
    %2489 = vst [vmem:[#allocation8 + $0x1d8] sm:$0xff] %v2425
    %2490 = vst [vmem:[#allocation8 + $0x1e0] sm:$0xff] %v2426
    %2491 = vst [vmem:[#allocation8 + $0x1e8] sm:$0xff] %v2427
    %2492 = vst [vmem:[#allocation8 + $0x1f0] sm:$0xff] %v2428
    %2493 = vst [vmem:[#allocation8 + $0x1f8] sm:$0xff] %v2429
    // Predicated region
    $region30: #{tpu_custom_call.1} parent=1 // pred_check
      _
    $region31: #{tpu_custom_call.1} parent=1 // pred_check_branch
      %2495 = sbr.rel (0) target = $region33
    $region32: #{tpu_custom_call.1} parent=1 // pred_region
      %s2497 = ssub.s32 8192, 8192
      %2498 = vsyncadd [#allocation4], %s2497
      %s2499 = sshll.u32 [#allocation7], 4
      %s2500 = int_to_ptr.vmem [resolvable:$true] %s2499
      %2505 = dma.vmem_to_hbm [thread:$0]  %s2500, 8192, %s5, [#allocation4], 128, 128, 8
    $region33: #{tpu_custom_call.1} parent=1 // pred_fallthru
      _
    // Predicated region
    $region34: #{tpu_custom_call.1} parent=1 // pred_check
      _
    $region35: #{tpu_custom_call.1} parent=1 // pred_check_branch
      %2507 = sbr.rel (0) target = $region37
    $region36: #{tpu_custom_call.1} parent=1 // pred_region
      %s2509 = ssub.s32 8192, 8192
      %2510 = vsyncadd [#allocation9], %s2509
      %s2511 = sshll.u32 [#allocation8], 4
      %s2512 = int_to_ptr.vmem [resolvable:$true] %s2511
      %2517 = dma.vmem_to_hbm [thread:$0]  %s2512, 8192, %s6, [#allocation9], 128, 128, 8
    $region37: #{tpu_custom_call.1} parent=1 // pred_fallthru
      _
    // Predicated region
    $region38: #{tpu_custom_call.1} parent=1 // pred_check
      _
    $region39: #{tpu_custom_call.1} parent=1 // pred_check_branch
      %2519 = sbr.rel (0) target = $region41
    $region40: #{tpu_custom_call.1} parent=1 // pred_region
      %2520 = dma.done [#allocation4], 8192
    $region41: #{tpu_custom_call.1} parent=1 // pred_fallthru
      _
    // Predicated region
    $region42: #{tpu_custom_call.1} parent=1 // pred_check
      _
    $region43: #{tpu_custom_call.1} parent=1 // pred_check_branch
      %2522 = sbr.rel (0) target = $region45
    $region44: #{tpu_custom_call.1} parent=1 // pred_region
      %2523 = dma.done [#allocation9], 8192
    $region45: #{tpu_custom_call.1} parent=1 // pred_fallthru
      _
    %2524 = vsyncpa [#allocation3], 1
    %2525 = vsyncpa [#allocation6], 1
    %2526 = vsyncpa [#allocation4], 1
    %2527 = vsyncpa [#allocation9], 1

</llo_original>
